<compile_context>
chip_gen: v7x
topology: tpu7x:2x2x1
jax: 0.10.0
libtpu: 0.0.40
codegen_flags: <defaults>
</compile_context>

<pallas_src>
import functools

import jax
import jax.numpy as jnp
from jax.experimental import pallas as pl
from jax.experimental.pallas import tpu as pltpu


def _sigmoid(x):
    # sigmoid(x) == 0.5 * tanh(0.5 * x) + 0.5 : single EUP op instead of exp + divide.
    return 0.5 * jnp.tanh(0.5 * x) + 0.5


# ---------------------------------------------------------------------------
# Kernel
# ---------------------------------------------------------------------------
def gru_classifier_kernel(gi_ref, whh_ref, bhn_ref, wfc_ref, bfc_ref,
                          out_ref, h_ref, *, unroll):
    """Grid = (batch_tiles, time_chunks).  One grid step = Tc GRU timesteps for one
    batch tile; the fc head is fused into the last time chunk.

    gi_ref:  (Tc, Bt, 3*Hp) bf16  x_t @ W_ih + b_ih + [b_hr|b_hz|0]  (gate order r|z|n,
                                  each gate 128-lane aligned; padded timesteps force z=1)
    whh_ref: (Hp, 3*Hp)     bf16  hidden->hidden weights (no bias)
    bhn_ref: (1, Hp)        f32   b_hn (must stay inside r * (h@W_hn + b_hn))
    wfc_ref: (Hp, Op)       bf16  fc weight
    bfc_ref: (1, Op)        f32   fc bias
    out_ref: (Bt, Op)       f32   logits (written at the last time chunk only)
    h_ref:   (Bt, Hp)       f32   VMEM scratch carrying the hidden state across chunks
    """
    c = pl.program_id(1)                          # time-chunk index

    @pl.when(c == 0)
    def _init():
        h_ref[...] = jnp.zeros_like(h_ref)

    Tc, Bt, three_hp = gi_ref.shape
    Hp = three_hp // 3

    # Loop invariants hoisted out of the recurrence (JAX does not CSE broadcasts).
    w_rz = whh_ref[:, :2 * Hp]                                   # (Hp, 2Hp) bf16
    w_n = whh_ref[:, 2 * Hp:]                                    # (Hp,  Hp) bf16
    b_hn = jnp.broadcast_to(bhn_ref[...], (Bt, Hp))              # (Bt,  Hp) f32

    def step(t, h):
        gi = gi_ref[t].astype(jnp.float32)                       # (Bt, 3Hp)
        hb = h.astype(jnp.bfloat16)
        # Split recurrence matmul: r/z sigmoids depend only on the first pass, so
        # their EUP work can overlap the n-gate MXU pass.
        gh_rz = jnp.dot(hb, w_rz, preferred_element_type=jnp.float32)
        gh_n = jnp.dot(hb, w_n, preferred_element_type=jnp.float32)
        r = _sigmoid(gi[:, :Hp] + gh_rz[:, :Hp])
        z = _sigmoid(gi[:, Hp:2 * Hp] + gh_rz[:, Hp:])
        n = jnp.tanh(gi[:, 2 * Hp:] + r * (gh_n + b_hn))
        return n + z * (h - n)                                   # == (1-z)*n + z*h

    h_new = jax.lax.fori_loop(0, Tc, step, h_ref[...], unroll=unroll)
    h_ref[...] = h_new

    @pl.when(c == pl.num_programs(1) - 1)
    def _finalize():
        logits = jnp.dot(h_new.astype(jnp.bfloat16), wfc_ref[...],
                         preferred_element_type=jnp.float32) + bfc_ref[...]
        out_ref[...] = logits.astype(out_ref.dtype)


# ---------------------------------------------------------------------------
# Wrapper / glue
# ---------------------------------------------------------------------------
def _round_up(x, m):
    return ((x + m - 1) // m) * m


def _num_tensorcores():
    """Best-effort TensorCore count (2 on v7x).  Defaults to 1 (always safe)."""
    try:
        info = pltpu.get_tpu_info()
        for attr in ("num_cores", "num_tensorcores", "tensorcore_count", "core_count"):
            v = getattr(info, attr, None)
            if v:
                return int(v)
    except Exception:
        pass
    try:
        kind = jax.devices()[0].device_kind.lower()
        if "v7" in kind or "7x" in kind:
            return 2
    except Exception:
        pass
    return 1


def _vmem_limit_bytes(Tc, Bt, Hp, Op):
    """Compute the scoped-VMEM limit from the actual block sizes (+ headroom)."""
    gi_blk = 2 * (Tc * Bt * 3 * Hp * 2)                 # bf16 gi, double-buffered
    weights = Hp * 3 * Hp * 2 + Hp * 4 + Hp * Op * 2 + Op * 4
    h_scr = Bt * Hp * 4
    out_blk = 2 * (Bt * Op * 4)
    need = gi_blk + 2 * weights + h_scr + out_blk       # 2x weights: worst-case buffering
    limit = max(need + (8 << 20), 16 << 20)             # compiler-scratch headroom
    cap = 96 << 20                                      # safe on v5e/v6e (128 MiB VMEM)
    try:
        cap = min(cap, int(pltpu.get_tpu_info().vmem_capacity_bytes) * 3 // 4)
    except Exception:
        pass
    return int(min(limit, cap))


def _gru_pallas(gi, w_hh_p, b_hn_p, w_fc_p, b_fc_p, *, n_btiles, Bt, Hp, Op, Tc,
                unroll, single_buffer_weights):
    three_hp = 3 * Hp
    n_chunks = gi.shape[0] // Tc
    resident = dict(pipeline_mode=pl.Buffered(1)) if single_buffer_weights else {}
    kernel = functools.partial(gru_classifier_kernel, unroll=unroll)

    return pl.pallas_call(
        kernel,
        out_shape=jax.ShapeDtypeStruct((n_btiles * Bt, Op), jnp.float32),
        grid_spec=pltpu.PrefetchScalarGridSpec(
            num_scalar_prefetch=0,
            grid=(n_btiles, n_chunks),
            in_specs=[
                pl.BlockSpec((Tc, Bt, three_hp), lambda b, c: (c, b, 0)),       # gi
                pl.BlockSpec((Hp, three_hp), lambda b, c: (0, 0), **resident),  # w_hh
                pl.BlockSpec((1, Hp), lambda b, c: (0, 0), **resident),         # b_hn
                pl.BlockSpec((Hp, Op), lambda b, c: (0, 0), **resident),        # w_fc
                pl.BlockSpec((1, Op), lambda b, c: (0, 0), **resident),         # b_fc
            ],
            out_specs=pl.BlockSpec((Bt, Op), lambda b, c: (b, 0)),
            scratch_shapes=[pltpu.VMEM((Bt, Hp), jnp.float32)],
        ),
        compiler_params=pltpu.CompilerParams(
            dimension_semantics=("parallel", "arbitrary"),   # batch tiles || ; time carry
            vmem_limit_bytes=_vmem_limit_bytes(Tc, Bt, Hp, Op),
        ),
    )(gi, w_hh_p, b_hn_p, w_fc_p, b_fc_p)


def gru_classifier_forward(tokens, params, *, time_chunk=None, batch_tiles=None):
    """tokens: (B, T) int32; params: dict of f32 weights. Returns (B, O) float32."""
    emb_table = params["embedding"]          # (V, E)
    w_ih = params["w_ih"]                    # (E, 3H)
    w_hh = params["w_hh"]                    # (H, 3H)
    b_ih = params["b_ih"]                    # (1, 3H)
    b_hh = params["b_hh"]                    # (1, 3H)
    w_fc = params["w_fc"]                    # (H, O)
    b_fc = params["b_fc"]                    # (1, O)

    B, T = tokens.shape
    H = w_hh.shape[0]
    O = w_fc.shape[1]

    Hp = _round_up(H, 128)                   # lane-align each gate
    Op = _round_up(O, 128)                   # lane-dense logits store

    # Batch tiling: use both TensorCores on 2-TC chips (v7x) when worthwhile.
    if batch_tiles is None:
        n_btiles = 2 if (_num_tensorcores() >= 2 and B > 8) else 1
    else:
        n_btiles = int(batch_tiles)
    Bp = _round_up(B, 8 * n_btiles)          # sublane-align each batch tile
    Bt = Bp // n_btiles

    # Time chunking: target ~128 steps/chunk; pad T with identity timesteps so any
    # (prime) T still uses large chunks instead of degenerating to Tc=1.
    if time_chunk is None:
        n_chunks = -(-T // min(128, max(T, 1)))
    else:
        n_chunks = -(-T // int(time_chunk))
    Tc = -(-T // n_chunks)
    Tpad = n_chunks * Tc
    unroll = max(1, min(Tc, 8))              # partial unroll keeps LLO visibility w/o bloat

    # ---- Fused embedding + input projection (hoisted out of the recurrence) ----
    # Fold b_ih plus the r/z parts of b_hh into the projection; b_hn must stay
    # inside r * (h@W_hn + b_hn) to match PyTorch GRU semantics.
    bias_fold = b_ih + jnp.concatenate(
        [b_hh[:, :H], b_hh[:, H:2 * H], jnp.zeros((1, H), b_hh.dtype)], axis=1)
    proj_table = emb_table @ w_ih + bias_fold                  # (V, 3H) f32

    def pad_gates(a, rows_to=None):
        """(R, 3H) -> (rows_to or R, 3*Hp), gate g in columns [g*Hp, g*Hp+H)."""
        R = a.shape[0]
        out = jnp.zeros((R if rows_to is None else rows_to, 3 * Hp), a.dtype)
        for g in range(3):
            out = out.at[:R, g * Hp:g * Hp + H].set(a[:, g * H:(g + 1) * H])
        return out

    # gi is streamed in bf16 (halves HBM traffic and the double-buffered VMEM block).
    proj_table_p = pad_gates(proj_table).astype(jnp.bfloat16)               # (V, 3Hp)
    w_hh_p = pad_gates(w_hh, rows_to=Hp).astype(jnp.bfloat16)               # (Hp, 3Hp)
    b_hn_p = jnp.zeros((1, Hp), jnp.float32).at[:, :H].set(b_hh[:, 2 * H:])  # (1, Hp)
    w_fc_p = jnp.zeros((Hp, Op), jnp.float32).at[:H, :O].set(w_fc).astype(jnp.bfloat16)
    b_fc_p = jnp.zeros((1, Op), jnp.float32).at[:, :O].set(b_fc)             # (1, Op)

    # Gather per-token input projections directly in time-major order.
    tok_p = jnp.zeros((Bp, T), tokens.dtype).at[:B].set(tokens)
    gi = jnp.take(proj_table_p, tok_p.T, axis=0)                             # (T, Bp, 3Hp)

    if Tpad > T:
        # Padded timesteps are identity updates: a huge i_z drives z -> 1, so
        # h_{t+1} = n + z*(h - n) == h (the real hidden state passes through).
        pad_blk = jnp.zeros((Tpad - T, Bp, 3 * Hp), gi.dtype)
        pad_blk = pad_blk.at[:, :, Hp:2 * Hp].set(jnp.asarray(1e4, gi.dtype))
        gi = jnp.concatenate([gi, pad_blk], axis=0)

    try:
        out_pad = _gru_pallas(gi, w_hh_p, b_hn_p, w_fc_p, b_fc_p,
                              n_btiles=n_btiles, Bt=Bt, Hp=Hp, Op=Op, Tc=Tc,
                              unroll=unroll, single_buffer_weights=True)
    except (TypeError, ValueError, NotImplementedError, pltpu.LoweringException):
        # Only the pipeline_mode=pl.Buffered(1) request may be unsupported on some
        # jax versions; the resident weights are tiny, so default double-buffering
        # is a harmless fallback.  Real VMEM / runtime errors are not swallowed.
        out_pad = _gru_pallas(gi, w_hh_p, b_hn_p, w_fc_p, b_fc_p,
                              n_btiles=n_btiles, Bt=Bt, Hp=Hp, Op=Op, Tc=Tc,
                              unroll=unroll, single_buffer_weights=False)

    return out_pad[:B, :O]


# ---------------------------------------------------------------------------
# Params + references
# ---------------------------------------------------------------------------
def init_params(key, vocab_size, embed_dim, hidden_dim, output_dim):
    ks = jax.random.split(key, 7)
    s = 1.0 / jnp.sqrt(hidden_dim)
    return {
        "embedding": jax.random.normal(ks[0], (vocab_size, embed_dim), jnp.float32),
        # Stored transposed relative to PyTorch (kernel does x @ W); gate order r|z|n.
        "w_ih": jax.random.uniform(ks[1], (embed_dim, 3 * hidden_dim), jnp.float32, -s, s),
        "w_hh": jax.random.uniform(ks[2], (hidden_dim, 3 * hidden_dim), jnp.float32, -s, s),
        "b_ih": jax.random.uniform(ks[3], (1, 3 * hidden_dim), jnp.float32, -s, s),
        "b_hh": jax.random.uniform(ks[4], (1, 3 * hidden_dim), jnp.float32, -s, s),
        "w_fc": jax.random.uniform(ks[5], (hidden_dim, output_dim), jnp.float32, -s, s),
        "b_fc": jax.random.uniform(ks[6], (1, output_dim), jnp.float32, -s, s),
    }


def reference_forward_f32(tokens, params):
    """Faithful f32 reference of the PyTorch GRUClassifier forward."""
    H = params["w_hh"].shape[0]
    emb = jnp.take(params["embedding"], tokens, axis=0)          # (B, T, E)
    gi_all = emb @ params["w_ih"] + params["b_ih"]               # (B, T, 3H)
    h = jnp.zeros((tokens.shape[0], H), jnp.float32)
    for t in range(tokens.shape[1]):
        gi = gi_all[:, t, :]
        gh = h @ params["w_hh"] + params["b_hh"]
        i_r, i_z, i_n = gi[:, :H], gi[:, H:2 * H], gi[:, 2 * H:]
        r = jax.nn.sigmoid(i_r + gh[:, :H])
        z = jax.nn.sigmoid(i_z + gh[:, H:2 * H])
        n = jnp.tanh(i_n + r * gh[:, 2 * H:])
        h = (1.0 - z) * n + z * h
    return h @ params["w_fc"] + params["b_fc"]


def reference_forward_matched(tokens, params):
    """Reference mirroring the kernel's formulation and precision (bf16 gi / weights /
    h matmul operand, f32 accumulation and gate math, folded r/z biases)."""
    H = params["w_hh"].shape[0]
    b_ih, b_hh = params["b_ih"], params["b_hh"]
    bias_fold = b_ih + jnp.concatenate(
        [b_hh[:, :H], b_hh[:, H:2 * H], jnp.zeros((1, H), b_hh.dtype)], axis=1)
    proj = (params["embedding"] @ params["w_ih"] + bias_fold).astype(jnp.bfloat16)
    gi_all = jnp.take(proj, tokens, axis=0)                      # (B, T, 3H) bf16
    w_hh = params["w_hh"].astype(jnp.bfloat16)
    b_hn = b_hh[:, 2 * H:]
    h = jnp.zeros((tokens.shape[0], H), jnp.float32)
    for t in range(tokens.shape[1]):
        gi = gi_all[:, t, :].astype(jnp.float32)
        gh = jnp.dot(h.astype(jnp.bfloat16), w_hh, preferred_element_type=jnp.float32)
        r = _sigmoid(gi[:, :H] + gh[:, :H])
        z = _sigmoid(gi[:, H:2 * H] + gh[:, H:2 * H])
        n = jnp.tanh(gi[:, 2 * H:] + r * (gh[:, 2 * H:] + b_hn))
        h = n + z * (h - n)
    return jnp.dot(h.astype(jnp.bfloat16), params["w_fc"].astype(jnp.bfloat16),
                   preferred_element_type=jnp.float32) + params["b_fc"]


# ---------------------------------------------------------------------------
if __name__ == "__main__":
    vocab_size, embed_dim, hidden_dim, output_dim = 64, 32, 32, 8
    batch, seq = 2, 8

    key = jax.random.PRNGKey(0)
    kp, kx = jax.random.split(key)
    params = init_params(kp, vocab_size, embed_dim, hidden_dim, output_dim)
    tokens = jax.random.randint(kx, (batch, seq), 0, vocab_size, dtype=jnp.int32)

    out = gru_classifier_forward(tokens, params)
    out = jax.block_until_ready(out)

    # Exercise the time-padding / identity-timestep path (Tc=3 -> Tpad=9, 1 pad step).
    out_chunked = jax.block_until_ready(
        gru_classifier_forward(tokens, params, time_chunk=3))

    ref_matched = reference_forward_matched(tokens, params)
    ref_f32 = reference_forward_f32(tokens, params)

    assert out.shape == (batch, output_dim)
    assert jnp.allclose(out, out_chunked, atol=1e-3, rtol=1e-3), (
        "chunked / padded-timestep path mismatch",
        float(jnp.max(jnp.abs(out - out_chunked))))
    assert jnp.allclose(out, ref_matched, atol=5e-3, rtol=5e-3), (
        "mismatch vs matched-precision reference",
        float(jnp.max(jnp.abs(out - ref_matched))))
    assert jnp.allclose(out, ref_f32, atol=1e-1, rtol=1e-1), (
        "mismatch vs f32 reference (bf16 weight/gi precision)",
        float(jnp.max(jnp.abs(out - ref_f32))))

    print("KERNEL_OK")
</pallas_src>

<mosaic_0001>
module attributes {stable_mosaic.version = 11 : i64} {
  func.func @gru_classifier_kernel(%arg0: i32, %arg1: i32, %arg2: memref<8x8x384xbf16, #tpu.memory_space<vmem>>, %arg3: memref<128x384xbf16, #tpu.memory_space<vmem>>, %arg4: memref<1x128xf32, #tpu.memory_space<vmem>>, %arg5: memref<128x128xbf16, #tpu.memory_space<vmem>>, %arg6: memref<1x128xf32, #tpu.memory_space<vmem>>, %arg7: memref<8x128xf32, #tpu.memory_space<vmem>>, %arg8: memref<8x128xf32, #tpu.memory_space<vmem>>) attributes {dimension_semantics = [#tpu.dimension_semantics<parallel>, #tpu.dimension_semantics<arbitrary>], iteration_bounds = array<i64: 1, 1>, scalar_prefetch = 0 : i64, scratch_operands = 1 : i64, tpu.core_type = #tpu.core_type<tc>, window_params = [{transform_indices = @transform_0, window_bounds = array<i64: 8, 8, 384>}, {pipeline_mode = #tpu.pipeline_mode<synchronous>, transform_indices = @transform_1, window_bounds = array<i64: 128, 384>}, {pipeline_mode = #tpu.pipeline_mode<synchronous>, transform_indices = @transform_2, window_bounds = array<i64: 1, 128>}, {pipeline_mode = #tpu.pipeline_mode<synchronous>, transform_indices = @transform_3, window_bounds = array<i64: 128, 128>}, {pipeline_mode = #tpu.pipeline_mode<synchronous>, transform_indices = @transform_4, window_bounds = array<i64: 1, 128>}, {transform_indices = @transform_5, window_bounds = array<i64: 8, 128>}]} {
    %c0_i32 = arith.constant 0 : i32
    %0 = arith.cmpi eq, %arg1, %c0_i32 : i32
    %1 = arith.extui %0 : i1 to i32
    %c0_i32_0 = arith.constant 0 : i32
    %2 = arith.cmpi ne, %1, %c0_i32_0 : i32
    scf.if %2 {
      %cst_91 = arith.constant 0.000000e+00 : f32
      %293 = vector.broadcast %cst_91 : f32 to vector<8x128xf32>
      %c0_92 = arith.constant 0 : index
      %c0_93 = arith.constant 0 : index
      %294 = vector.load %arg8[%c0_92, %c0_93] : memref<8x128xf32, #tpu.memory_space<vmem>>, vector<8x128xf32>
      tpu.vector_store %arg8[%c0_92, %c0_93], %293 {strides = array<i32>} : memref<8x128xf32, #tpu.memory_space<vmem>>, vector<8x128xf32>,
    } else {
    }
    %c0 = arith.constant 0 : index
    %c0_1 = arith.constant 0 : index
    %3 = vector.load %arg3[%c0, %c0_1] : memref<128x384xbf16, #tpu.memory_space<vmem>>, vector<128x256xbf16>
    %c0_2 = arith.constant 0 : index
    %c256 = arith.constant 256 : index
    %4 = vector.load %arg3[%c0_2, %c256] : memref<128x384xbf16, #tpu.memory_space<vmem>>, vector<128x128xbf16>
    %c0_3 = arith.constant 0 : index
    %c0_4 = arith.constant 0 : index
    %5 = vector.load %arg4[%c0_3, %c0_4] : memref<1x128xf32, #tpu.memory_space<vmem>>, vector<1x128xf32>
    %6 = vector.shape_cast %5 : vector<1x128xf32> to vector<1x128xf32>
    %7 = vector.broadcast %6 : vector<1x128xf32> to vector<8x128xf32>
    %c0_5 = arith.constant 0 : index
    %c0_6 = arith.constant 0 : index
    %8 = vector.load %arg8[%c0_5, %c0_6] : memref<8x128xf32, #tpu.memory_space<vmem>>, vector<8x128xf32>
    %c0_i32_7 = arith.constant 0 : i32
    %9 = arith.index_cast %c0_i32_7 : i32 to index
    %c0_8 = arith.constant 0 : index
    %c0_9 = arith.constant 0 : index
    %10 = vector.load %arg2[%9, %c0_8, %c0_9] : memref<8x8x384xbf16, #tpu.memory_space<vmem>>, vector<1x8x384xbf16>
    %11 = vector.shape_cast %10 : vector<1x8x384xbf16> to vector<8x384xbf16>
    %12 = arith.extf %11 : vector<8x384xbf16> to vector<8x384xf32>
    %13 = arith.truncf %8 : vector<8x128xf32> to vector<8x128xbf16>
    %cst = arith.constant dense<0.000000e+00> : vector<8x256xf32>
    %14 = tpu.matmul %13, %3, %cst {dimension_numbers = #tpu.dot_dimension_numbers<[1], [0], [0], [1], [0, 0, 1, 1], [], []>} : vector<8x128xbf16>, vector<128x256xbf16>, vector<8x256xf32> -> vector<8x256xf32>
    %cst_10 = arith.constant dense<0.000000e+00> : vector<8x128xf32>
    %15 = tpu.matmul %13, %4, %cst_10 {dimension_numbers = #tpu.dot_dimension_numbers<[1], [0], [0], [1], [0, 0, 1, 1], [], []>} : vector<8x128xbf16>, vector<128x128xbf16>, vector<8x128xf32> -> vector<8x128xf32>
    %16 = vector.extract_strided_slice %12 {offsets = [0, 0], sizes = [8, 128], strides = [1, 1]} : vector<8x384xf32> to vector<8x128xf32>
    %17 = vector.extract_strided_slice %14 {offsets = [0, 0], sizes = [8, 128], strides = [1, 1]} : vector<8x256xf32> to vector<8x128xf32>
    %18 = arith.addf %16, %17 : vector<8x128xf32>
    %cst_11 = arith.constant 5.000000e-01 : f32
    %19 = vector.broadcast %cst_11 : f32 to vector<8x128xf32>
    %20 = arith.mulf %19, %18 : vector<8x128xf32>
    %21 = math.tanh %20 : vector<8x128xf32>
    %cst_12 = arith.constant 5.000000e-01 : f32
    %22 = vector.broadcast %cst_12 : f32 to vector<8x128xf32>
    %23 = arith.mulf %22, %21 : vector<8x128xf32>
    %cst_13 = arith.constant 5.000000e-01 : f32
    %24 = vector.broadcast %cst_13 : f32 to vector<8x128xf32>
    %25 = arith.addf %23, %24 : vector<8x128xf32>
    %26 = vector.extract_strided_slice %12 {offsets = [0, 128], sizes = [8, 128], strides = [1, 1]} : vector<8x384xf32> to vector<8x128xf32>
    %27 = vector.extract_strided_slice %14 {offsets = [0, 128], sizes = [8, 128], strides = [1, 1]} : vector<8x256xf32> to vector<8x128xf32>
    %28 = arith.addf %26, %27 : vector<8x128xf32>
    %cst_14 = arith.constant 5.000000e-01 : f32
    %29 = vector.broadcast %cst_14 : f32 to vector<8x128xf32>
    %30 = arith.mulf %29, %28 : vector<8x128xf32>
    %31 = math.tanh %30 : vector<8x128xf32>
    %cst_15 = arith.constant 5.000000e-01 : f32
    %32 = vector.broadcast %cst_15 : f32 to vector<8x128xf32>
    %33 = arith.mulf %32, %31 : vector<8x128xf32>
    %cst_16 = arith.constant 5.000000e-01 : f32
    %34 = vector.broadcast %cst_16 : f32 to vector<8x128xf32>
    %35 = arith.addf %33, %34 : vector<8x128xf32>
    %36 = vector.extract_strided_slice %12 {offsets = [0, 256], sizes = [8, 128], strides = [1, 1]} : vector<8x384xf32> to vector<8x128xf32>
    %37 = arith.addf %15, %7 : vector<8x128xf32>
    %38 = arith.mulf %25, %37 : vector<8x128xf32>
    %39 = arith.addf %36, %38 : vector<8x128xf32>
    %40 = math.tanh %39 : vector<8x128xf32>
    %41 = arith.subf %8, %40 : vector<8x128xf32>
    %42 = arith.mulf %35, %41 : vector<8x128xf32>
    %43 = arith.addf %40, %42 : vector<8x128xf32>
    %c1_i32 = arith.constant 1 : i32
    %44 = arith.index_cast %c1_i32 : i32 to index
    %c0_17 = arith.constant 0 : index
    %c0_18 = arith.constant 0 : index
    %45 = vector.load %arg2[%44, %c0_17, %c0_18] : memref<8x8x384xbf16, #tpu.memory_space<vmem>>, vector<1x8x384xbf16>
    %46 = vector.shape_cast %45 : vector<1x8x384xbf16> to vector<8x384xbf16>
    %47 = arith.extf %46 : vector<8x384xbf16> to vector<8x384xf32>
    %48 = arith.truncf %43 : vector<8x128xf32> to vector<8x128xbf16>
    %cst_19 = arith.constant dense<0.000000e+00> : vector<8x256xf32>
    %49 = tpu.matmul %48, %3, %cst_19 {dimension_numbers = #tpu.dot_dimension_numbers<[1], [0], [0], [1], [0, 0, 1, 1], [], []>} : vector<8x128xbf16>, vector<128x256xbf16>, vector<8x256xf32> -> vector<8x256xf32>
    %cst_20 = arith.constant dense<0.000000e+00> : vector<8x128xf32>
    %50 = tpu.matmul %48, %4, %cst_20 {dimension_numbers = #tpu.dot_dimension_numbers<[1], [0], [0], [1], [0, 0, 1, 1], [], []>} : vector<8x128xbf16>, vector<128x128xbf16>, vector<8x128xf32> -> vector<8x128xf32>
    %51 = vector.extract_strided_slice %47 {offsets = [0, 0], sizes = [8, 128], strides = [1, 1]} : vector<8x384xf32> to vector<8x128xf32>
    %52 = vector.extract_strided_slice %49 {offsets = [0, 0], sizes = [8, 128], strides = [1, 1]} : vector<8x256xf32> to vector<8x128xf32>
    %53 = arith.addf %51, %52 : vector<8x128xf32>
    %cst_21 = arith.constant 5.000000e-01 : f32
    %54 = vector.broadcast %cst_21 : f32 to vector<8x128xf32>
    %55 = arith.mulf %54, %53 : vector<8x128xf32>
    %56 = math.tanh %55 : vector<8x128xf32>
    %cst_22 = arith.constant 5.000000e-01 : f32
    %57 = vector.broadcast %cst_22 : f32 to vector<8x128xf32>
    %58 = arith.mulf %57, %56 : vector<8x128xf32>
    %cst_23 = arith.constant 5.000000e-01 : f32
    %59 = vector.broadcast %cst_23 : f32 to vector<8x128xf32>
    %60 = arith.addf %58, %59 : vector<8x128xf32>
    %61 = vector.extract_strided_slice %47 {offsets = [0, 128], sizes = [8, 128], strides = [1, 1]} : vector<8x384xf32> to vector<8x128xf32>
    %62 = vector.extract_strided_slice %49 {offsets = [0, 128], sizes = [8, 128], strides = [1, 1]} : vector<8x256xf32> to vector<8x128xf32>
    %63 = arith.addf %61, %62 : vector<8x128xf32>
    %cst_24 = arith.constant 5.000000e-01 : f32
    %64 = vector.broadcast %cst_24 : f32 to vector<8x128xf32>
    %65 = arith.mulf %64, %63 : vector<8x128xf32>
    %66 = math.tanh %65 : vector<8x128xf32>
    %cst_25 = arith.constant 5.000000e-01 : f32
    %67 = vector.broadcast %cst_25 : f32 to vector<8x128xf32>
    %68 = arith.mulf %67, %66 : vector<8x128xf32>
    %cst_26 = arith.constant 5.000000e-01 : f32
    %69 = vector.broadcast %cst_26 : f32 to vector<8x128xf32>
    %70 = arith.addf %68, %69 : vector<8x128xf32>
    %71 = vector.extract_strided_slice %47 {offsets = [0, 256], sizes = [8, 128], strides = [1, 1]} : vector<8x384xf32> to vector<8x128xf32>
    %72 = arith.addf %50, %7 : vector<8x128xf32>
    %73 = arith.mulf %60, %72 : vector<8x128xf32>
    %74 = arith.addf %71, %73 : vector<8x128xf32>
    %75 = math.tanh %74 : vector<8x128xf32>
    %76 = arith.subf %43, %75 : vector<8x128xf32>
    %77 = arith.mulf %70, %76 : vector<8x128xf32>
    %78 = arith.addf %75, %77 : vector<8x128xf32>
    %c2_i32 = arith.constant 2 : i32
    %79 = arith.index_cast %c2_i32 : i32 to index
    %c0_27 = arith.constant 0 : index
    %c0_28 = arith.constant 0 : index
    %80 = vector.load %arg2[%79, %c0_27, %c0_28] : memref<8x8x384xbf16, #tpu.memory_space<vmem>>, vector<1x8x384xbf16>
    %81 = vector.shape_cast %80 : vector<1x8x384xbf16> to vector<8x384xbf16>
    %82 = arith.extf %81 : vector<8x384xbf16> to vector<8x384xf32>
    %83 = arith.truncf %78 : vector<8x128xf32> to vector<8x128xbf16>
    %cst_29 = arith.constant dense<0.000000e+00> : vector<8x256xf32>
    %84 = tpu.matmul %83, %3, %cst_29 {dimension_numbers = #tpu.dot_dimension_numbers<[1], [0], [0], [1], [0, 0, 1, 1], [], []>} : vector<8x128xbf16>, vector<128x256xbf16>, vector<8x256xf32> -> vector<8x256xf32>
    %cst_30 = arith.constant dense<0.000000e+00> : vector<8x128xf32>
    %85 = tpu.matmul %83, %4, %cst_30 {dimension_numbers = #tpu.dot_dimension_numbers<[1], [0], [0], [1], [0, 0, 1, 1], [], []>} : vector<8x128xbf16>, vector<128x128xbf16>, vector<8x128xf32> -> vector<8x128xf32>
    %86 = vector.extract_strided_slice %82 {offsets = [0, 0], sizes = [8, 128], strides = [1, 1]} : vector<8x384xf32> to vector<8x128xf32>
    %87 = vector.extract_strided_slice %84 {offsets = [0, 0], sizes = [8, 128], strides = [1, 1]} : vector<8x256xf32> to vector<8x128xf32>
    %88 = arith.addf %86, %87 : vector<8x128xf32>
    %cst_31 = arith.constant 5.000000e-01 : f32
    %89 = vector.broadcast %cst_31 : f32 to vector<8x128xf32>
    %90 = arith.mulf %89, %88 : vector<8x128xf32>
    %91 = math.tanh %90 : vector<8x128xf32>
    %cst_32 = arith.constant 5.000000e-01 : f32
    %92 = vector.broadcast %cst_32 : f32 to vector<8x128xf32>
    %93 = arith.mulf %92, %91 : vector<8x128xf32>
    %cst_33 = arith.constant 5.000000e-01 : f32
    %94 = vector.broadcast %cst_33 : f32 to vector<8x128xf32>
    %95 = arith.addf %93, %94 : vector<8x128xf32>
    %96 = vector.extract_strided_slice %82 {offsets = [0, 128], sizes = [8, 128], strides = [1, 1]} : vector<8x384xf32> to vector<8x128xf32>
    %97 = vector.extract_strided_slice %84 {offsets = [0, 128], sizes = [8, 128], strides = [1, 1]} : vector<8x256xf32> to vector<8x128xf32>
    %98 = arith.addf %96, %97 : vector<8x128xf32>
    %cst_34 = arith.constant 5.000000e-01 : f32
    %99 = vector.broadcast %cst_34 : f32 to vector<8x128xf32>
    %100 = arith.mulf %99, %98 : vector<8x128xf32>
    %101 = math.tanh %100 : vector<8x128xf32>
    %cst_35 = arith.constant 5.000000e-01 : f32
    %102 = vector.broadcast %cst_35 : f32 to vector<8x128xf32>
    %103 = arith.mulf %102, %101 : vector<8x128xf32>
    %cst_36 = arith.constant 5.000000e-01 : f32
    %104 = vector.broadcast %cst_36 : f32 to vector<8x128xf32>
    %105 = arith.addf %103, %104 : vector<8x128xf32>
    %106 = vector.extract_strided_slice %82 {offsets = [0, 256], sizes = [8, 128], strides = [1, 1]} : vector<8x384xf32> to vector<8x128xf32>
    %107 = arith.addf %85, %7 : vector<8x128xf32>
    %108 = arith.mulf %95, %107 : vector<8x128xf32>
    %109 = arith.addf %106, %108 : vector<8x128xf32>
    %110 = math.tanh %109 : vector<8x128xf32>
    %111 = arith.subf %78, %110 : vector<8x128xf32>
    %112 = arith.mulf %105, %111 : vector<8x128xf32>
    %113 = arith.addf %110, %112 : vector<8x128xf32>
    %c3_i32 = arith.constant 3 : i32
    %114 = arith.index_cast %c3_i32 : i32 to index
    %c0_37 = arith.constant 0 : index
    %c0_38 = arith.constant 0 : index
    %115 = vector.load %arg2[%114, %c0_37, %c0_38] : memref<8x8x384xbf16, #tpu.memory_space<vmem>>, vector<1x8x384xbf16>
    %116 = vector.shape_cast %115 : vector<1x8x384xbf16> to vector<8x384xbf16>
    %117 = arith.extf %116 : vector<8x384xbf16> to vector<8x384xf32>
    %118 = arith.truncf %113 : vector<8x128xf32> to vector<8x128xbf16>
    %cst_39 = arith.constant dense<0.000000e+00> : vector<8x256xf32>
    %119 = tpu.matmul %118, %3, %cst_39 {dimension_numbers = #tpu.dot_dimension_numbers<[1], [0], [0], [1], [0, 0, 1, 1], [], []>} : vector<8x128xbf16>, vector<128x256xbf16>, vector<8x256xf32> -> vector<8x256xf32>
    %cst_40 = arith.constant dense<0.000000e+00> : vector<8x128xf32>
    %120 = tpu.matmul %118, %4, %cst_40 {dimension_numbers = #tpu.dot_dimension_numbers<[1], [0], [0], [1], [0, 0, 1, 1], [], []>} : vector<8x128xbf16>, vector<128x128xbf16>, vector<8x128xf32> -> vector<8x128xf32>
    %121 = vector.extract_strided_slice %117 {offsets = [0, 0], sizes = [8, 128], strides = [1, 1]} : vector<8x384xf32> to vector<8x128xf32>
    %122 = vector.extract_strided_slice %119 {offsets = [0, 0], sizes = [8, 128], strides = [1, 1]} : vector<8x256xf32> to vector<8x128xf32>
    %123 = arith.addf %121, %122 : vector<8x128xf32>
    %cst_41 = arith.constant 5.000000e-01 : f32
    %124 = vector.broadcast %cst_41 : f32 to vector<8x128xf32>
    %125 = arith.mulf %124, %123 : vector<8x128xf32>
    %126 = math.tanh %125 : vector<8x128xf32>
    %cst_42 = arith.constant 5.000000e-01 : f32
    %127 = vector.broadcast %cst_42 : f32 to vector<8x128xf32>
    %128 = arith.mulf %127, %126 : vector<8x128xf32>
    %cst_43 = arith.constant 5.000000e-01 : f32
    %129 = vector.broadcast %cst_43 : f32 to vector<8x128xf32>
    %130 = arith.addf %128, %129 : vector<8x128xf32>
    %131 = vector.extract_strided_slice %117 {offsets = [0, 128], sizes = [8, 128], strides = [1, 1]} : vector<8x384xf32> to vector<8x128xf32>
    %132 = vector.extract_strided_slice %119 {offsets = [0, 128], sizes = [8, 128], strides = [1, 1]} : vector<8x256xf32> to vector<8x128xf32>
    %133 = arith.addf %131, %132 : vector<8x128xf32>
    %cst_44 = arith.constant 5.000000e-01 : f32
    %134 = vector.broadcast %cst_44 : f32 to vector<8x128xf32>
    %135 = arith.mulf %134, %133 : vector<8x128xf32>
    %136 = math.tanh %135 : vector<8x128xf32>
    %cst_45 = arith.constant 5.000000e-01 : f32
    %137 = vector.broadcast %cst_45 : f32 to vector<8x128xf32>
    %138 = arith.mulf %137, %136 : vector<8x128xf32>
    %cst_46 = arith.constant 5.000000e-01 : f32
    %139 = vector.broadcast %cst_46 : f32 to vector<8x128xf32>
    %140 = arith.addf %138, %139 : vector<8x128xf32>
    %141 = vector.extract_strided_slice %117 {offsets = [0, 256], sizes = [8, 128], strides = [1, 1]} : vector<8x384xf32> to vector<8x128xf32>
    %142 = arith.addf %120, %7 : vector<8x128xf32>
    %143 = arith.mulf %130, %142 : vector<8x128xf32>
    %144 = arith.addf %141, %143 : vector<8x128xf32>
    %145 = math.tanh %144 : vector<8x128xf32>
    %146 = arith.subf %113, %145 : vector<8x128xf32>
    %147 = arith.mulf %140, %146 : vector<8x128xf32>
    %148 = arith.addf %145, %147 : vector<8x128xf32>
    %c4_i32 = arith.constant 4 : i32
    %149 = arith.index_cast %c4_i32 : i32 to index
    %c0_47 = arith.constant 0 : index
    %c0_48 = arith.constant 0 : index
    %150 = vector.load %arg2[%149, %c0_47, %c0_48] : memref<8x8x384xbf16, #tpu.memory_space<vmem>>, vector<1x8x384xbf16>
    %151 = vector.shape_cast %150 : vector<1x8x384xbf16> to vector<8x384xbf16>
    %152 = arith.extf %151 : vector<8x384xbf16> to vector<8x384xf32>
    %153 = arith.truncf %148 : vector<8x128xf32> to vector<8x128xbf16>
    %cst_49 = arith.constant dense<0.000000e+00> : vector<8x256xf32>
    %154 = tpu.matmul %153, %3, %cst_49 {dimension_numbers = #tpu.dot_dimension_numbers<[1], [0], [0], [1], [0, 0, 1, 1], [], []>} : vector<8x128xbf16>, vector<128x256xbf16>, vector<8x256xf32> -> vector<8x256xf32>
    %cst_50 = arith.constant dense<0.000000e+00> : vector<8x128xf32>
    %155 = tpu.matmul %153, %4, %cst_50 {dimension_numbers = #tpu.dot_dimension_numbers<[1], [0], [0], [1], [0, 0, 1, 1], [], []>} : vector<8x128xbf16>, vector<128x128xbf16>, vector<8x128xf32> -> vector<8x128xf32>
    %156 = vector.extract_strided_slice %152 {offsets = [0, 0], sizes = [8, 128], strides = [1, 1]} : vector<8x384xf32> to vector<8x128xf32>
    %157 = vector.extract_strided_slice %154 {offsets = [0, 0], sizes = [8, 128], strides = [1, 1]} : vector<8x256xf32> to vector<8x128xf32>
    %158 = arith.addf %156, %157 : vector<8x128xf32>
    %cst_51 = arith.constant 5.000000e-01 : f32
    %159 = vector.broadcast %cst_51 : f32 to vector<8x128xf32>
    %160 = arith.mulf %159, %158 : vector<8x128xf32>
    %161 = math.tanh %160 : vector<8x128xf32>
    %cst_52 = arith.constant 5.000000e-01 : f32
    %162 = vector.broadcast %cst_52 : f32 to vector<8x128xf32>
    %163 = arith.mulf %162, %161 : vector<8x128xf32>
    %cst_53 = arith.constant 5.000000e-01 : f32
    %164 = vector.broadcast %cst_53 : f32 to vector<8x128xf32>
    %165 = arith.addf %163, %164 : vector<8x128xf32>
    %166 = vector.extract_strided_slice %152 {offsets = [0, 128], sizes = [8, 128], strides = [1, 1]} : vector<8x384xf32> to vector<8x128xf32>
    %167 = vector.extract_strided_slice %154 {offsets = [0, 128], sizes = [8, 128], strides = [1, 1]} : vector<8x256xf32> to vector<8x128xf32>
    %168 = arith.addf %166, %167 : vector<8x128xf32>
    %cst_54 = arith.constant 5.000000e-01 : f32
    %169 = vector.broadcast %cst_54 : f32 to vector<8x128xf32>
    %170 = arith.mulf %169, %168 : vector<8x128xf32>
    %171 = math.tanh %170 : vector<8x128xf32>
    %cst_55 = arith.constant 5.000000e-01 : f32
    %172 = vector.broadcast %cst_55 : f32 to vector<8x128xf32>
    %173 = arith.mulf %172, %171 : vector<8x128xf32>
    %cst_56 = arith.constant 5.000000e-01 : f32
    %174 = vector.broadcast %cst_56 : f32 to vector<8x128xf32>
    %175 = arith.addf %173, %174 : vector<8x128xf32>
    %176 = vector.extract_strided_slice %152 {offsets = [0, 256], sizes = [8, 128], strides = [1, 1]} : vector<8x384xf32> to vector<8x128xf32>
    %177 = arith.addf %155, %7 : vector<8x128xf32>
    %178 = arith.mulf %165, %177 : vector<8x128xf32>
    %179 = arith.addf %176, %178 : vector<8x128xf32>
    %180 = math.tanh %179 : vector<8x128xf32>
    %181 = arith.subf %148, %180 : vector<8x128xf32>
    %182 = arith.mulf %175, %181 : vector<8x128xf32>
    %183 = arith.addf %180, %182 : vector<8x128xf32>
    %c5_i32 = arith.constant 5 : i32
    %184 = arith.index_cast %c5_i32 : i32 to index
    %c0_57 = arith.constant 0 : index
    %c0_58 = arith.constant 0 : index
    %185 = vector.load %arg2[%184, %c0_57, %c0_58] : memref<8x8x384xbf16, #tpu.memory_space<vmem>>, vector<1x8x384xbf16>
    %186 = vector.shape_cast %185 : vector<1x8x384xbf16> to vector<8x384xbf16>
    %187 = arith.extf %186 : vector<8x384xbf16> to vector<8x384xf32>
    %188 = arith.truncf %183 : vector<8x128xf32> to vector<8x128xbf16>
    %cst_59 = arith.constant dense<0.000000e+00> : vector<8x256xf32>
    %189 = tpu.matmul %188, %3, %cst_59 {dimension_numbers = #tpu.dot_dimension_numbers<[1], [0], [0], [1], [0, 0, 1, 1], [], []>} : vector<8x128xbf16>, vector<128x256xbf16>, vector<8x256xf32> -> vector<8x256xf32>
    %cst_60 = arith.constant dense<0.000000e+00> : vector<8x128xf32>
    %190 = tpu.matmul %188, %4, %cst_60 {dimension_numbers = #tpu.dot_dimension_numbers<[1], [0], [0], [1], [0, 0, 1, 1], [], []>} : vector<8x128xbf16>, vector<128x128xbf16>, vector<8x128xf32> -> vector<8x128xf32>
    %191 = vector.extract_strided_slice %187 {offsets = [0, 0], sizes = [8, 128], strides = [1, 1]} : vector<8x384xf32> to vector<8x128xf32>
    %192 = vector.extract_strided_slice %189 {offsets = [0, 0], sizes = [8, 128], strides = [1, 1]} : vector<8x256xf32> to vector<8x128xf32>
    %193 = arith.addf %191, %192 : vector<8x128xf32>
    %cst_61 = arith.constant 5.000000e-01 : f32
    %194 = vector.broadcast %cst_61 : f32 to vector<8x128xf32>
    %195 = arith.mulf %194, %193 : vector<8x128xf32>
    %196 = math.tanh %195 : vector<8x128xf32>
    %cst_62 = arith.constant 5.000000e-01 : f32
    %197 = vector.broadcast %cst_62 : f32 to vector<8x128xf32>
    %198 = arith.mulf %197, %196 : vector<8x128xf32>
    %cst_63 = arith.constant 5.000000e-01 : f32
    %199 = vector.broadcast %cst_63 : f32 to vector<8x128xf32>
    %200 = arith.addf %198, %199 : vector<8x128xf32>
    %201 = vector.extract_strided_slice %187 {offsets = [0, 128], sizes = [8, 128], strides = [1, 1]} : vector<8x384xf32> to vector<8x128xf32>
    %202 = vector.extract_strided_slice %189 {offsets = [0, 128], sizes = [8, 128], strides = [1, 1]} : vector<8x256xf32> to vector<8x128xf32>
    %203 = arith.addf %201, %202 : vector<8x128xf32>
    %cst_64 = arith.constant 5.000000e-01 : f32
    %204 = vector.broadcast %cst_64 : f32 to vector<8x128xf32>
    %205 = arith.mulf %204, %203 : vector<8x128xf32>
    %206 = math.tanh %205 : vector<8x128xf32>
    %cst_65 = arith.constant 5.000000e-01 : f32
    %207 = vector.broadcast %cst_65 : f32 to vector<8x128xf32>
    %208 = arith.mulf %207, %206 : vector<8x128xf32>
    %cst_66 = arith.constant 5.000000e-01 : f32
    %209 = vector.broadcast %cst_66 : f32 to vector<8x128xf32>
    %210 = arith.addf %208, %209 : vector<8x128xf32>
    %211 = vector.extract_strided_slice %187 {offsets = [0, 256], sizes = [8, 128], strides = [1, 1]} : vector<8x384xf32> to vector<8x128xf32>
    %212 = arith.addf %190, %7 : vector<8x128xf32>
    %213 = arith.mulf %200, %212 : vector<8x128xf32>
    %214 = arith.addf %211, %213 : vector<8x128xf32>
    %215 = math.tanh %214 : vector<8x128xf32>
    %216 = arith.subf %183, %215 : vector<8x128xf32>
    %217 = arith.mulf %210, %216 : vector<8x128xf32>
    %218 = arith.addf %215, %217 : vector<8x128xf32>
    %c6_i32 = arith.constant 6 : i32
    %219 = arith.index_cast %c6_i32 : i32 to index
    %c0_67 = arith.constant 0 : index
    %c0_68 = arith.constant 0 : index
    %220 = vector.load %arg2[%219, %c0_67, %c0_68] : memref<8x8x384xbf16, #tpu.memory_space<vmem>>, vector<1x8x384xbf16>
    %221 = vector.shape_cast %220 : vector<1x8x384xbf16> to vector<8x384xbf16>
    %222 = arith.extf %221 : vector<8x384xbf16> to vector<8x384xf32>
    %223 = arith.truncf %218 : vector<8x128xf32> to vector<8x128xbf16>
    %cst_69 = arith.constant dense<0.000000e+00> : vector<8x256xf32>
    %224 = tpu.matmul %223, %3, %cst_69 {dimension_numbers = #tpu.dot_dimension_numbers<[1], [0], [0], [1], [0, 0, 1, 1], [], []>} : vector<8x128xbf16>, vector<128x256xbf16>, vector<8x256xf32> -> vector<8x256xf32>
    %cst_70 = arith.constant dense<0.000000e+00> : vector<8x128xf32>
    %225 = tpu.matmul %223, %4, %cst_70 {dimension_numbers = #tpu.dot_dimension_numbers<[1], [0], [0], [1], [0, 0, 1, 1], [], []>} : vector<8x128xbf16>, vector<128x128xbf16>, vector<8x128xf32> -> vector<8x128xf32>
    %226 = vector.extract_strided_slice %222 {offsets = [0, 0], sizes = [8, 128], strides = [1, 1]} : vector<8x384xf32> to vector<8x128xf32>
    %227 = vector.extract_strided_slice %224 {offsets = [0, 0], sizes = [8, 128], strides = [1, 1]} : vector<8x256xf32> to vector<8x128xf32>
    %228 = arith.addf %226, %227 : vector<8x128xf32>
    %cst_71 = arith.constant 5.000000e-01 : f32
    %229 = vector.broadcast %cst_71 : f32 to vector<8x128xf32>
    %230 = arith.mulf %229, %228 : vector<8x128xf32>
    %231 = math.tanh %230 : vector<8x128xf32>
    %cst_72 = arith.constant 5.000000e-01 : f32
    %232 = vector.broadcast %cst_72 : f32 to vector<8x128xf32>
    %233 = arith.mulf %232, %231 : vector<8x128xf32>
    %cst_73 = arith.constant 5.000000e-01 : f32
    %234 = vector.broadcast %cst_73 : f32 to vector<8x128xf32>
    %235 = arith.addf %233, %234 : vector<8x128xf32>
    %236 = vector.extract_strided_slice %222 {offsets = [0, 128], sizes = [8, 128], strides = [1, 1]} : vector<8x384xf32> to vector<8x128xf32>
    %237 = vector.extract_strided_slice %224 {offsets = [0, 128], sizes = [8, 128], strides = [1, 1]} : vector<8x256xf32> to vector<8x128xf32>
    %238 = arith.addf %236, %237 : vector<8x128xf32>
    %cst_74 = arith.constant 5.000000e-01 : f32
    %239 = vector.broadcast %cst_74 : f32 to vector<8x128xf32>
    %240 = arith.mulf %239, %238 : vector<8x128xf32>
    %241 = math.tanh %240 : vector<8x128xf32>
    %cst_75 = arith.constant 5.000000e-01 : f32
    %242 = vector.broadcast %cst_75 : f32 to vector<8x128xf32>
    %243 = arith.mulf %242, %241 : vector<8x128xf32>
    %cst_76 = arith.constant 5.000000e-01 : f32
    %244 = vector.broadcast %cst_76 : f32 to vector<8x128xf32>
    %245 = arith.addf %243, %244 : vector<8x128xf32>
    %246 = vector.extract_strided_slice %222 {offsets = [0, 256], sizes = [8, 128], strides = [1, 1]} : vector<8x384xf32> to vector<8x128xf32>
    %247 = arith.addf %225, %7 : vector<8x128xf32>
    %248 = arith.mulf %235, %247 : vector<8x128xf32>
    %249 = arith.addf %246, %248 : vector<8x128xf32>
    %250 = math.tanh %249 : vector<8x128xf32>
    %251 = arith.subf %218, %250 : vector<8x128xf32>
    %252 = arith.mulf %245, %251 : vector<8x128xf32>
    %253 = arith.addf %250, %252 : vector<8x128xf32>
    %c7_i32 = arith.constant 7 : i32
    %254 = arith.index_cast %c7_i32 : i32 to index
    %c0_77 = arith.constant 0 : index
    %c0_78 = arith.constant 0 : index
    %255 = vector.load %arg2[%254, %c0_77, %c0_78] : memref<8x8x384xbf16, #tpu.memory_space<vmem>>, vector<1x8x384xbf16>
    %256 = vector.shape_cast %255 : vector<1x8x384xbf16> to vector<8x384xbf16>
    %257 = arith.extf %256 : vector<8x384xbf16> to vector<8x384xf32>
    %258 = arith.truncf %253 : vector<8x128xf32> to vector<8x128xbf16>
    %cst_79 = arith.constant dense<0.000000e+00> : vector<8x256xf32>
    %259 = tpu.matmul %258, %3, %cst_79 {dimension_numbers = #tpu.dot_dimension_numbers<[1], [0], [0], [1], [0, 0, 1, 1], [], []>} : vector<8x128xbf16>, vector<128x256xbf16>, vector<8x256xf32> -> vector<8x256xf32>
    %cst_80 = arith.constant dense<0.000000e+00> : vector<8x128xf32>
    %260 = tpu.matmul %258, %4, %cst_80 {dimension_numbers = #tpu.dot_dimension_numbers<[1], [0], [0], [1], [0, 0, 1, 1], [], []>} : vector<8x128xbf16>, vector<128x128xbf16>, vector<8x128xf32> -> vector<8x128xf32>
    %261 = vector.extract_strided_slice %257 {offsets = [0, 0], sizes = [8, 128], strides = [1, 1]} : vector<8x384xf32> to vector<8x128xf32>
    %262 = vector.extract_strided_slice %259 {offsets = [0, 0], sizes = [8, 128], strides = [1, 1]} : vector<8x256xf32> to vector<8x128xf32>
    %263 = arith.addf %261, %262 : vector<8x128xf32>
    %cst_81 = arith.constant 5.000000e-01 : f32
    %264 = vector.broadcast %cst_81 : f32 to vector<8x128xf32>
    %265 = arith.mulf %264, %263 : vector<8x128xf32>
    %266 = math.tanh %265 : vector<8x128xf32>
    %cst_82 = arith.constant 5.000000e-01 : f32
    %267 = vector.broadcast %cst_82 : f32 to vector<8x128xf32>
    %268 = arith.mulf %267, %266 : vector<8x128xf32>
    %cst_83 = arith.constant 5.000000e-01 : f32
    %269 = vector.broadcast %cst_83 : f32 to vector<8x128xf32>
    %270 = arith.addf %268, %269 : vector<8x128xf32>
    %271 = vector.extract_strided_slice %257 {offsets = [0, 128], sizes = [8, 128], strides = [1, 1]} : vector<8x384xf32> to vector<8x128xf32>
    %272 = vector.extract_strided_slice %259 {offsets = [0, 128], sizes = [8, 128], strides = [1, 1]} : vector<8x256xf32> to vector<8x128xf32>
    %273 = arith.addf %271, %272 : vector<8x128xf32>
    %cst_84 = arith.constant 5.000000e-01 : f32
    %274 = vector.broadcast %cst_84 : f32 to vector<8x128xf32>
    %275 = arith.mulf %274, %273 : vector<8x128xf32>
    %276 = math.tanh %275 : vector<8x128xf32>
    %cst_85 = arith.constant 5.000000e-01 : f32
    %277 = vector.broadcast %cst_85 : f32 to vector<8x128xf32>
    %278 = arith.mulf %277, %276 : vector<8x128xf32>
    %cst_86 = arith.constant 5.000000e-01 : f32
    %279 = vector.broadcast %cst_86 : f32 to vector<8x128xf32>
    %280 = arith.addf %278, %279 : vector<8x128xf32>
    %281 = vector.extract_strided_slice %257 {offsets = [0, 256], sizes = [8, 128], strides = [1, 1]} : vector<8x384xf32> to vector<8x128xf32>
    %282 = arith.addf %260, %7 : vector<8x128xf32>
    %283 = arith.mulf %270, %282 : vector<8x128xf32>
    %284 = arith.addf %281, %283 : vector<8x128xf32>
    %285 = math.tanh %284 : vector<8x128xf32>
    %286 = arith.subf %253, %285 : vector<8x128xf32>
    %287 = arith.mulf %280, %286 : vector<8x128xf32>
    %288 = arith.addf %285, %287 : vector<8x128xf32>
    %c8_i32 = arith.constant 8 : i32
    %c0_87 = arith.constant 0 : index
    %c0_88 = arith.constant 0 : index
    %289 = vector.load %arg8[%c0_87, %c0_88] : memref<8x128xf32, #tpu.memory_space<vmem>>, vector<8x128xf32>
    tpu.vector_store %arg8[%c0_87, %c0_88], %288 {strides = array<i32>} : memref<8x128xf32, #tpu.memory_space<vmem>>, vector<8x128xf32>,
    %c0_i32_89 = arith.constant 0 : i32
    %290 = arith.cmpi eq, %arg1, %c0_i32_89 : i32
    %291 = arith.extui %290 : i1 to i32
    %c0_i32_90 = arith.constant 0 : i32
    %292 = arith.cmpi ne, %291, %c0_i32_90 : i32
    scf.if %292 {
      %293 = arith.truncf %288 : vector<8x128xf32> to vector<8x128xbf16>
      %c0_91 = arith.constant 0 : index
      %c0_92 = arith.constant 0 : index
      %294 = vector.load %arg5[%c0_91, %c0_92] : memref<128x128xbf16, #tpu.memory_space<vmem>>, vector<128x128xbf16>
      %cst_93 = arith.constant dense<0.000000e+00> : vector<8x128xf32>
      %295 = tpu.matmul %293, %294, %cst_93 {dimension_numbers = #tpu.dot_dimension_numbers<[1], [0], [0], [1], [0, 0, 1, 1], [], []>} : vector<8x128xbf16>, vector<128x128xbf16>, vector<8x128xf32> -> vector<8x128xf32>
      %c0_94 = arith.constant 0 : index
      %c0_95 = arith.constant 0 : index
      %296 = vector.load %arg6[%c0_94, %c0_95] : memref<1x128xf32, #tpu.memory_space<vmem>>, vector<1x128xf32>
      %297 = vector.broadcast %296 : vector<1x128xf32> to vector<8x128xf32>
      %298 = arith.addf %295, %297 : vector<8x128xf32>
      %c0_96 = arith.constant 0 : index
      %c0_97 = arith.constant 0 : index
      %299 = vector.load %arg7[%c0_96, %c0_97] : memref<8x128xf32, #tpu.memory_space<vmem>>, vector<8x128xf32>
      tpu.vector_store %arg7[%c0_96, %c0_97], %298 {strides = array<i32>} : memref<8x128xf32, #tpu.memory_space<vmem>>, vector<8x128xf32>,
    } else {
    }
    return
  }
  func.func @transform_0(%arg0: i32, %arg1: i32) -> (i32, i32, i32) {
    %c0_i32 = arith.constant 0 : i32
    %c0_i32_0 = arith.constant 0 : i32
    return %arg1, %arg0, %c0_i32 : i32, i32, i32
  }
  func.func @transform_1(%arg0: i32, %arg1: i32) -> (i32, i32) {
    %c0_i32 = arith.constant 0 : i32
    %c0_i32_0 = arith.constant 0 : i32
    %c0_i32_1 = arith.constant 0 : i32
    return %c0_i32, %c0_i32_0 : i32, i32
  }
  func.func @transform_2(%arg0: i32, %arg1: i32) -> (i32, i32) {
    %c0_i32 = arith.constant 0 : i32
    %c0_i32_0 = arith.constant 0 : i32
    %c0_i32_1 = arith.constant 0 : i32
    return %c0_i32, %c0_i32_0 : i32, i32
  }
  func.func @transform_3(%arg0: i32, %arg1: i32) -> (i32, i32) {
    %c0_i32 = arith.constant 0 : i32
    %c0_i32_0 = arith.constant 0 : i32
    %c0_i32_1 = arith.constant 0 : i32
    return %c0_i32, %c0_i32_0 : i32, i32
  }
  func.func @transform_4(%arg0: i32, %arg1: i32) -> (i32, i32) {
    %c0_i32 = arith.constant 0 : i32
    %c0_i32_0 = arith.constant 0 : i32
    %c0_i32_1 = arith.constant 0 : i32
    return %c0_i32, %c0_i32_0 : i32, i32
  }
  func.func @transform_5(%arg0: i32, %arg1: i32) -> (i32, i32) {
    %c0_i32 = arith.constant 0 : i32
    %c0_i32_0 = arith.constant 0 : i32
    return %arg0, %c0_i32 : i32, i32
  }
}

</mosaic_0001>

<llo_original>
// kernel: tpu_custom_call.1
$region0: #{tpu_custom_call.1}
  #allocation0 [shape = 'u32[]', space=smem, size = 0x4, offset = 0x4, fixed_abs, tag = 'smem constant byte address 0x4 - core index']
  #allocation1 [shape = 'u32[144,128]{1,0:T(1,128)}', space=vmem, size = 0x12000, scoped, tag = 'internal scratch']
  #allocation2 [shape = 'f32[8,128]{1,0:T(8,128)}', space=vmem, size = 0x1000, scoped, tag = 'scratch operand']
  %s0 = inlined_call_operand.hbm [shape: bf16[8,8,384], index: 0, kind: input, shape index: {}]
  %s1 = inlined_call_operand.hbm [shape: bf16[128,384], index: 1, kind: input, shape index: {}]
  %s2 = inlined_call_operand.vmem [shape: f32[1,128], index: 2, kind: input, shape index: {}]
  %s3 = inlined_call_operand.hbm [shape: bf16[128,128], index: 3, kind: input, shape index: {}]
  %s4 = inlined_call_operand.vmem [shape: f32[1,128], index: 4, kind: input, shape index: {}]
  %s5 = inlined_call_operand.hbm [shape: f32[8,128], index: 5, kind: output, shape index: {}]
  %s6 = sld [smem:[#allocation0]]
  $region50: #{tpu_custom_call.1} parent=0
    _
  %s8 = ssub.s32 1, %s6
  %s9 = scalar_select 0, %s8, %s6
  $region1: #{tpu_custom_call.1} parent=0
    #allocation3 [shape = 'u8[49152]{0}', space=vmem, size = 0xc000, scoped, tag = 'input window, operand 0, single buffered']
    #allocation4 [shape = 's32[1]{0}', space=sflag, size = 0x4, scoped, tag = 'scoped memory for tpu_custom_call.1']
    #allocation5 [shape = 's32[1]{0}', space=sflag, size = 0x4, scoped, tag = 'scoped memory for tpu_custom_call.1']
    #allocation6 [shape = 'u8[98304]{0}', space=vmem, size = 0x18000, scoped, tag = 'input window, operand 1, single buffered']
    #allocation7 [shape = 's32[1]{0}', space=sflag, size = 0x4, scoped, tag = 'scoped memory for tpu_custom_call.1']
    #allocation8 [shape = 'u8[32768]{0}', space=vmem, size = 0x8000, scoped, tag = 'input window, operand 3, single buffered']
    #allocation9 [shape = 'u8[4096]{0}', space=vmem, size = 0x1000, scoped, tag = 'output window, operand 0, single buffered']
    %10 = vsyncpa [#allocation4], 0
    %11 = vsyncpa [#allocation7], 0
    %12 = vsyncpa [#allocation5], 0
    // Predicated region
    $region2: #{tpu_custom_call.1} parent=1 // pred_check
      _
    $region3: #{tpu_custom_call.1} parent=1 // pred_check_branch
      %14 = sbr.rel (0) target = $region5
    $region4: #{tpu_custom_call.1} parent=1 // pred_region
      %s16 = ssub.s32 1536, 1536
      %17 = vsyncadd [#allocation4], %s16
      %s18 = sshll.u32 [#allocation3], 4
      %s19 = int_to_ptr.vmem [resolvable:$true] %s18
      %24 = dma.hbm_to_vmem [thread:$0]  %s0, 1536, %s19, [#allocation4], 192, 192, 12
    $region5: #{tpu_custom_call.1} parent=1 // pred_fallthru
      _
    // Predicated region
    $region6: #{tpu_custom_call.1} parent=1 // pred_check
      _
    $region7: #{tpu_custom_call.1} parent=1 // pred_check_branch
      %26 = sbr.rel (0) target = $region9
    $region8: #{tpu_custom_call.1} parent=1 // pred_region
      %s28 = ssub.s32 3072, 3072
      %29 = vsyncadd [#allocation7], %s28
      %s30 = sshll.u32 [#allocation6], 4
      %s31 = int_to_ptr.vmem [resolvable:$true] %s30
      %36 = dma.hbm_to_vmem [thread:$0]  %s1, 3072, %s31, [#allocation7], 192, 192, 12
    $region9: #{tpu_custom_call.1} parent=1 // pred_fallthru
      _
    // Predicated region
    $region10: #{tpu_custom_call.1} parent=1 // pred_check
      _
    $region11: #{tpu_custom_call.1} parent=1 // pred_check_branch
      %38 = sbr.rel (0) target = $region13
    $region12: #{tpu_custom_call.1} parent=1 // pred_region
      _
    $region13: #{tpu_custom_call.1} parent=1 // pred_fallthru
      _
    // Predicated region
    $region14: #{tpu_custom_call.1} parent=1 // pred_check
      _
    $region15: #{tpu_custom_call.1} parent=1 // pred_check_branch
      %40 = sbr.rel (0) target = $region17
    $region16: #{tpu_custom_call.1} parent=1 // pred_region
      %s42 = ssub.s32 1024, 1024
      %43 = vsyncadd [#allocation7], %s42
      %s44 = sshll.u32 [#allocation8], 4
      %s45 = int_to_ptr.vmem [resolvable:$true] %s44
      %50 = dma.hbm_to_vmem [thread:$0]  %s3, 1024, %s45, [#allocation7], 64, 64, 4
    $region17: #{tpu_custom_call.1} parent=1 // pred_fallthru
      _
    // Predicated region
    $region18: #{tpu_custom_call.1} parent=1 // pred_check
      _
    $region19: #{tpu_custom_call.1} parent=1 // pred_check_branch
      %52 = sbr.rel (0) target = $region21
    $region20: #{tpu_custom_call.1} parent=1 // pred_region
      _
    $region21: #{tpu_custom_call.1} parent=1 // pred_fallthru
      _
    // Predicated region
    $region22: #{tpu_custom_call.1} parent=1 // pred_check
      _
    $region23: #{tpu_custom_call.1} parent=1 // pred_check_branch
      %54 = sbr.rel (0) target = $region25
    $region24: #{tpu_custom_call.1} parent=1 // pred_region
      %55 = dma.done [#allocation4], 1536
    $region25: #{tpu_custom_call.1} parent=1 // pred_fallthru
      _
    // Predicated region
    $region26: #{tpu_custom_call.1} parent=1 // pred_check
      _
    $region27: #{tpu_custom_call.1} parent=1 // pred_check_branch
      %57 = sbr.rel (0) target = $region29
    $region28: #{tpu_custom_call.1} parent=1 // pred_region
      %58 = dma.done [#allocation7], 3072
    $region29: #{tpu_custom_call.1} parent=1 // pred_fallthru
      _
    // Predicated region
    $region30: #{tpu_custom_call.1} parent=1 // pred_check
      _
    $region31: #{tpu_custom_call.1} parent=1 // pred_check_branch
      %60 = sbr.rel (0) target = $region33
    $region32: #{tpu_custom_call.1} parent=1 // pred_region
      %61 = dma.done [#allocation7], 1024
    $region33: #{tpu_custom_call.1} parent=1 // pred_fallthru
      _
    %p63 = scmp.eq.s32.totalorder 0, 0
    // Predicated region
    $region34: #{tpu_custom_call.1} parent=1 // pred_check
      %p64 = pneg %p63
    $region35: #{tpu_custom_call.1} parent=1 // pred_check_branch
      %66 = sbr.rel (%p64) target = $region37
    $region36: #{tpu_custom_call.1} parent=1 // pred_region
      %67 = vst [vmem:[#allocation2] sm:$0xff] 0.0
    $region37: #{tpu_custom_call.1} parent=1 // pred_fallthru
      _
    %v68 = vld [vmem:[#allocation6] sm:$0xff]
    %v69 = vld [vmem:[#allocation6 + $0xc] sm:$0xff]
    %v70 = vld [vmem:[#allocation6 + $0x18] sm:$0xff]
    %v71 = vld [vmem:[#allocation6 + $0x24] sm:$0xff]
    %v72 = vld [vmem:[#allocation6 + $0x30] sm:$0xff]
    %v73 = vld [vmem:[#allocation6 + $0x3c] sm:$0xff]
    %v74 = vld [vmem:[#allocation6 + $0x48] sm:$0xff]
    %v75 = vld [vmem:[#allocation6 + $0x54] sm:$0xff]
    %v76 = vld [vmem:[#allocation6 + $0x60] sm:$0xff]
    %v77 = vld [vmem:[#allocation6 + $0x6c] sm:$0xff]
    %v78 = vld [vmem:[#allocation6 + $0x78] sm:$0xff]
    %v79 = vld [vmem:[#allocation6 + $0x84] sm:$0xff]
    %v80 = vld [vmem:[#allocation6 + $0x90] sm:$0xff]
    %v81 = vld [vmem:[#allocation6 + $0x9c] sm:$0xff]
    %v82 = vld [vmem:[#allocation6 + $0xa8] sm:$0xff]
    %v83 = vld [vmem:[#allocation6 + $0xb4] sm:$0xff]
    %v84 = vld [vmem:[#allocation6 + $0x8] sm:$0xf]
    %v85 = vld [vmem:[#allocation6 + $0x14] sm:$0xf]
    %v86 = vld [vmem:[#allocation6 + $0x20] sm:$0xf]
    %v87 = vld [vmem:[#allocation6 + $0x2c] sm:$0xf]
    %v88 = vld [vmem:[#allocation6 + $0x38] sm:$0xf]
    %v89 = vld [vmem:[#allocation6 + $0x44] sm:$0xf]
    %v90 = vld [vmem:[#allocation6 + $0x50] sm:$0xf]
    %v91 = vld [vmem:[#allocation6 + $0x5c] sm:$0xf]
    %v92 = vld [vmem:[#allocation6 + $0x68] sm:$0xf]
    %v93 = vld [vmem:[#allocation6 + $0x74] sm:$0xf]
    %v94 = vld [vmem:[#allocation6 + $0x80] sm:$0xf]
    %v95 = vld [vmem:[#allocation6 + $0x8c] sm:$0xf]
    %v96 = vld [vmem:[#allocation6 + $0x98] sm:$0xf]
    %v97 = vld [vmem:[#allocation6 + $0xa4] sm:$0xf]
    %v98 = vld [vmem:[#allocation6 + $0xb0] sm:$0xf]
    %v99 = vld [vmem:[#allocation6 + $0xbc] sm:$0xf]
    %v100 = vld [vmem:[%s2] sm:$0x1]
    %v102 = vlaneseq
    %v103 = vshrl.u32 %v102, 7
    %v104 = vsub.s32 0, %v103
    %v105 = vrot.slane %v100, %v104
    %v107 = vld [vmem:[#allocation2] sm:$0xff]
    %v108 = vld [vmem:[#allocation3] sm:$0xff]
    %v109 = vld [vmem:[#allocation3 + $0x8] sm:$0xf]
    %v110 = vunpack.c.l.bf16 %v108
    %v111 = vunpack.c.h.bf16 %v108
    %v112 = vunpack.c.l.bf16 %v109
    %v113 = vpack.c.bf16 %v107, %v107
    %v130 = vunpack.c.l.b16 %v68
    %v131 = vunpack.c.h.b16 %v68
    %v132 = vunpack.c.l.b16 %v69
    %v133 = vunpack.c.h.b16 %v69
    %v134 = vunpack.c.l.b16 %v70
    %v135 = vunpack.c.h.b16 %v70
    %v136 = vunpack.c.l.b16 %v71
    %v137 = vunpack.c.h.b16 %v71
    %v138 = vunpack.c.l.b16 %v72
    %v139 = vunpack.c.h.b16 %v72
    %v140 = vunpack.c.l.b16 %v73
    %v141 = vunpack.c.h.b16 %v73
    %v142 = vunpack.c.l.b16 %v74
    %v143 = vunpack.c.h.b16 %v74
    %v144 = vunpack.c.l.b16 %v75
    %v145 = vunpack.c.h.b16 %v75
    %v146 = vunpack.c.l.b16 %v76
    %v147 = vunpack.c.h.b16 %v76
    %v148 = vunpack.c.l.b16 %v77
    %v149 = vunpack.c.h.b16 %v77
    %v150 = vunpack.c.l.b16 %v78
    %v151 = vunpack.c.h.b16 %v78
    %v152 = vunpack.c.l.b16 %v79
    %v153 = vunpack.c.h.b16 %v79
    %v154 = vunpack.c.l.b16 %v80
    %v155 = vunpack.c.h.b16 %v80
    %v156 = vunpack.c.l.b16 %v81
    %v157 = vunpack.c.h.b16 %v81
    %v158 = vunpack.c.l.b16 %v82
    %v159 = vunpack.c.h.b16 %v82
    %v160 = vunpack.c.l.b16 %v83
    %v161 = vunpack.c.h.b16 %v83
    %v162 = vpack.c.b16 %v132, %v130
    %v163 = vpack.c.b16 %v133, %v131
    %v164 = vpack.c.b16 %v136, %v134
    %v165 = vpack.c.b16 %v137, %v135
    %v166 = vpack.c.b16 %v140, %v138
    %v167 = vpack.c.b16 %v141, %v139
    %v168 = vpack.c.b16 %v144, %v142
    %v169 = vpack.c.b16 %v145, %v143
    %v170 = vpack.c.b16 %v148, %v146
    %v171 = vpack.c.b16 %v149, %v147
    %v172 = vpack.c.b16 %v152, %v150
    %v173 = vpack.c.b16 %v153, %v151
    %v174 = vpack.c.b16 %v156, %v154
    %v175 = vpack.c.b16 %v157, %v155
    %v176 = vpack.c.b16 %v160, %v158
    %v177 = vpack.c.b16 %v161, %v159
    %194 = vmatprep.subr.bf16.mxu0 %v163
    %195 = vmatpush1.bf16.msra.mxu0 %v162
    %196 = vmatprep.subr.bf16.mxu0 %v165
    %197 = vmatpush1.bf16.msra.mxu0 %v164
    %198 = vmatprep.subr.bf16.mxu0 %v167
    %199 = vmatpush1.bf16.msra.mxu0 %v166
    %200 = vmatprep.subr.bf16.mxu0 %v169
    %201 = vmatpush1.bf16.msra.mxu0 %v168
    %202 = vmatprep.subr.bf16.mxu0 %v171
    %203 = vmatpush1.bf16.msra.mxu0 %v170
    %204 = vmatprep.subr.bf16.mxu0 %v173
    %205 = vmatpush1.bf16.msra.mxu0 %v172
    %206 = vmatprep.subr.bf16.mxu0 %v175
    %207 = vmatpush1.bf16.msra.mxu0 %v174
    %208 = vmatprep.subr.bf16.mxu0 %v177
    %209 = vmatpush1.bf16.msra.mxu0 %v176
    %210 = vmatprep.subr.bf16.mxu0 0
    %211 = vmatpush1.bf16.msra.mxu0 0
    %212 = vmatprep.subr.bf16.mxu0 0
    %213 = vmatpush1.bf16.msra.mxu0 0
    %214 = vmatprep.subr.bf16.mxu0 0
    %215 = vmatpush1.bf16.msra.mxu0 0
    %216 = vmatprep.subr.bf16.mxu0 0
    %217 = vmatpush1.bf16.msra.mxu0 0
    %218 = vmatprep.subr.bf16.mxu0 0
    %219 = vmatpush1.bf16.msra.mxu0 0
    %220 = vmatprep.subr.bf16.mxu0 0
    %221 = vmatpush1.bf16.msra.mxu0 0
    %222 = vmatprep.subr.bf16.mxu0 0
    %223 = vmatpush1.bf16.msra.mxu0 0
    %224 = vmatprep.subr.bf16.mxu0 0
    %225 = vmatpush1.bf16.msra.mxu0 0
    %226 = vmatprep.mubr.bf16.mxu0 0
    %227 = vmatmul.mubr.bf16.gmra.mrb[0].mxu0 %v113
    %v228 = vpop.f32.mrb[0].mxu0
    %v229 = vadd.f32 0.0, %v228
    %v230 = vpop.f32.mrb[0].mxu0
    %v231 = vadd.f32 0.0, %v230
    %v232 = vpop.f32.mrb[0].mxu0
    %v233 = vpop.f32.mrb[0].mxu0
    %234 = vdwg.mxu0
    %v235 = vadd.f32 %v110, %v229
    %v236 = vmul.f32 %v235, 0.5
    %v237 = vtanh.pop %v236
    %v238 = vmul.f32 %v237, 0.5
    %v239 = vadd.f32 %v238, 0.5
    %v240 = vadd.f32 %v111, %v231
    %v241 = vmul.f32 %v240, 0.5
    %v242 = vtanh.pop %v241
    %v243 = vmul.f32 %v242, 0.5
    %v244 = vadd.f32 %v243, 0.5
    %v261 = vunpack.c.l.b16 %v84
    %v262 = vunpack.c.l.b16 %v85
    %v263 = vunpack.c.l.b16 %v86
    %v264 = vunpack.c.l.b16 %v87
    %v265 = vunpack.c.l.b16 %v88
    %v266 = vunpack.c.l.b16 %v89
    %v267 = vunpack.c.l.b16 %v90
    %v268 = vunpack.c.l.b16 %v91
    %v269 = vunpack.c.l.b16 %v92
    %v270 = vunpack.c.l.b16 %v93
    %v271 = vunpack.c.l.b16 %v94
    %v272 = vunpack.c.l.b16 %v95
    %v273 = vunpack.c.l.b16 %v96
    %v274 = vunpack.c.l.b16 %v97
    %v275 = vunpack.c.l.b16 %v98
    %v276 = vunpack.c.l.b16 %v99
    %v277 = vpack.c.b16 %v262, %v261
    %v278 = vpack.c.b16 %v264, %v263
    %v279 = vpack.c.b16 %v266, %v265
    %v280 = vpack.c.b16 %v268, %v267
    %v281 = vpack.c.b16 %v270, %v269
    %v282 = vpack.c.b16 %v272, %v271
    %v283 = vpack.c.b16 %v274, %v273
    %v284 = vpack.c.b16 %v276, %v275
    %293 = vmatprep.subr.bf16.mxu0 0
    %294 = vmatpush1.bf16.msra.mxu0 %v277
    %295 = vmatprep.subr.bf16.mxu0 0
    %296 = vmatpush1.bf16.msra.mxu0 %v278
    %297 = vmatprep.subr.bf16.mxu0 0
    %298 = vmatpush1.bf16.msra.mxu0 %v279
    %299 = vmatprep.subr.bf16.mxu0 0
    %300 = vmatpush1.bf16.msra.mxu0 %v280
    %301 = vmatprep.subr.bf16.mxu0 0
    %302 = vmatpush1.bf16.msra.mxu0 %v281
    %303 = vmatprep.subr.bf16.mxu0 0
    %304 = vmatpush1.bf16.msra.mxu0 %v282
    %305 = vmatprep.subr.bf16.mxu0 0
    %306 = vmatpush1.bf16.msra.mxu0 %v283
    %307 = vmatprep.subr.bf16.mxu0 0
    %308 = vmatpush1.bf16.msra.mxu0 %v284
    %309 = vmatprep.subr.bf16.mxu0 0
    %310 = vmatpush1.bf16.msra.mxu0 0
    %311 = vmatprep.subr.bf16.mxu0 0
    %312 = vmatpush1.bf16.msra.mxu0 0
    %313 = vmatprep.subr.bf16.mxu0 0
    %314 = vmatpush1.bf16.msra.mxu0 0
    %315 = vmatprep.subr.bf16.mxu0 0
    %316 = vmatpush1.bf16.msra.mxu0 0
    %317 = vmatprep.subr.bf16.mxu0 0
    %318 = vmatpush1.bf16.msra.mxu0 0
    %319 = vmatprep.subr.bf16.mxu0 0
    %320 = vmatpush1.bf16.msra.mxu0 0
    %321 = vmatprep.subr.bf16.mxu0 0
    %322 = vmatpush1.bf16.msra.mxu0 0
    %323 = vmatprep.subr.bf16.mxu0 0
    %324 = vmatpush1.bf16.msra.mxu0 0
    %325 = vmatprep.mubr.bf16.mxu0 0
    %326 = vmatmul.mubr.bf16.gmra.mrb[0].mxu0 %v113
    %v327 = vpop.f32.mrb[0].mxu0
    %v328 = vadd.f32 %v105, %v327
    %v329 = vpop.f32.mrb[0].mxu0
    %v330 = vpop.f32.mrb[0].mxu0
    %v331 = vpop.f32.mrb[0].mxu0
    %332 = vdwg.mxu0
    %v333 = vmul.f32 %v239, %v328
    %v334 = vadd.f32 %v112, %v333
    %v335 = vtanh.pop %v334
    %v336 = vsub.f32 %v107, %v335
    %v337 = vmul.f32 %v244, %v336
    %v338 = vadd.f32 %v335, %v337
    %s339 = scalar_lea.vmem [#allocation3], 12
    %v340 = vld [vmem:[%s339] sm:$0xff]
    %v341 = vld [vmem:[%s339 + $0x8] sm:$0xf]
    %v342 = vunpack.c.l.bf16 %v340
    %v343 = vunpack.c.h.bf16 %v340
    %v344 = vunpack.c.l.bf16 %v341
    %v345 = vpack.c.bf16 %v338, %v338
    %346 = vmatprep.subr.bf16.mxu0 %v163
    %347 = vmatpush1.bf16.msra.mxu0 %v162
    %348 = vmatprep.subr.bf16.mxu0 %v165
    %349 = vmatpush1.bf16.msra.mxu0 %v164
    %350 = vmatprep.subr.bf16.mxu0 %v167
    %351 = vmatpush1.bf16.msra.mxu0 %v166
    %352 = vmatprep.subr.bf16.mxu0 %v169
    %353 = vmatpush1.bf16.msra.mxu0 %v168
    %354 = vmatprep.subr.bf16.mxu0 %v171
    %355 = vmatpush1.bf16.msra.mxu0 %v170
    %356 = vmatprep.subr.bf16.mxu0 %v173
    %357 = vmatpush1.bf16.msra.mxu0 %v172
    %358 = vmatprep.subr.bf16.mxu0 %v175
    %359 = vmatpush1.bf16.msra.mxu0 %v174
    %360 = vmatprep.subr.bf16.mxu0 %v177
    %361 = vmatpush1.bf16.msra.mxu0 %v176
    %362 = vmatprep.subr.bf16.mxu0 0
    %363 = vmatpush1.bf16.msra.mxu0 0
    %364 = vmatprep.subr.bf16.mxu0 0
    %365 = vmatpush1.bf16.msra.mxu0 0
    %366 = vmatprep.subr.bf16.mxu0 0
    %367 = vmatpush1.bf16.msra.mxu0 0
    %368 = vmatprep.subr.bf16.mxu0 0
    %369 = vmatpush1.bf16.msra.mxu0 0
    %370 = vmatprep.subr.bf16.mxu0 0
    %371 = vmatpush1.bf16.msra.mxu0 0
    %372 = vmatprep.subr.bf16.mxu0 0
    %373 = vmatpush1.bf16.msra.mxu0 0
    %374 = vmatprep.subr.bf16.mxu0 0
    %375 = vmatpush1.bf16.msra.mxu0 0
    %376 = vmatprep.subr.bf16.mxu0 0
    %377 = vmatpush1.bf16.msra.mxu0 0
    %378 = vmatprep.mubr.bf16.mxu0 0
    %379 = vmatmul.mubr.bf16.gmra.mrb[0].mxu0 %v345
    %v380 = vpop.f32.mrb[0].mxu0
    %v381 = vadd.f32 0.0, %v380
    %v382 = vpop.f32.mrb[0].mxu0
    %v383 = vadd.f32 0.0, %v382
    %v384 = vpop.f32.mrb[0].mxu0
    %v385 = vpop.f32.mrb[0].mxu0
    %386 = vdwg.mxu0
    %v387 = vadd.f32 %v342, %v381
    %v388 = vmul.f32 %v387, 0.5
    %v389 = vtanh.pop %v388
    %v390 = vmul.f32 %v389, 0.5
    %v391 = vadd.f32 %v390, 0.5
    %v392 = vadd.f32 %v343, %v383
    %v393 = vmul.f32 %v392, 0.5
    %v394 = vtanh.pop %v393
    %v395 = vmul.f32 %v394, 0.5
    %v396 = vadd.f32 %v395, 0.5
    %397 = vmatprep.subr.bf16.mxu0 0
    %398 = vmatpush1.bf16.msra.mxu0 %v277
    %399 = vmatprep.subr.bf16.mxu0 0
    %400 = vmatpush1.bf16.msra.mxu0 %v278
    %401 = vmatprep.subr.bf16.mxu0 0
    %402 = vmatpush1.bf16.msra.mxu0 %v279
    %403 = vmatprep.subr.bf16.mxu0 0
    %404 = vmatpush1.bf16.msra.mxu0 %v280
    %405 = vmatprep.subr.bf16.mxu0 0
    %406 = vmatpush1.bf16.msra.mxu0 %v281
    %407 = vmatprep.subr.bf16.mxu0 0
    %408 = vmatpush1.bf16.msra.mxu0 %v282
    %409 = vmatprep.subr.bf16.mxu0 0
    %410 = vmatpush1.bf16.msra.mxu0 %v283
    %411 = vmatprep.subr.bf16.mxu0 0
    %412 = vmatpush1.bf16.msra.mxu0 %v284
    %413 = vmatprep.subr.bf16.mxu0 0
    %414 = vmatpush1.bf16.msra.mxu0 0
    %415 = vmatprep.subr.bf16.mxu0 0
    %416 = vmatpush1.bf16.msra.mxu0 0
    %417 = vmatprep.subr.bf16.mxu0 0
    %418 = vmatpush1.bf16.msra.mxu0 0
    %419 = vmatprep.subr.bf16.mxu0 0
    %420 = vmatpush1.bf16.msra.mxu0 0
    %421 = vmatprep.subr.bf16.mxu0 0
    %422 = vmatpush1.bf16.msra.mxu0 0
    %423 = vmatprep.subr.bf16.mxu0 0
    %424 = vmatpush1.bf16.msra.mxu0 0
    %425 = vmatprep.subr.bf16.mxu0 0
    %426 = vmatpush1.bf16.msra.mxu0 0
    %427 = vmatprep.subr.bf16.mxu0 0
    %428 = vmatpush1.bf16.msra.mxu0 0
    %429 = vmatprep.mubr.bf16.mxu0 0
    %430 = vmatmul.mubr.bf16.gmra.mrb[0].mxu0 %v345
    %v431 = vpop.f32.mrb[0].mxu0
    %v432 = vadd.f32 %v105, %v431
    %v433 = vpop.f32.mrb[0].mxu0
    %v434 = vpop.f32.mrb[0].mxu0
    %v435 = vpop.f32.mrb[0].mxu0
    %436 = vdwg.mxu0
    %v437 = vmul.f32 %v391, %v432
    %v438 = vadd.f32 %v344, %v437
    %v439 = vtanh.pop %v438
    %v440 = vsub.f32 %v338, %v439
    %v441 = vmul.f32 %v396, %v440
    %v442 = vadd.f32 %v439, %v441
    %s443 = scalar_lea.vmem [#allocation3], 24
    %v444 = vld [vmem:[%s443] sm:$0xff]
    %v445 = vld [vmem:[%s443 + $0x8] sm:$0xf]
    %v446 = vunpack.c.l.bf16 %v444
    %v447 = vunpack.c.h.bf16 %v444
    %v448 = vunpack.c.l.bf16 %v445
    %v449 = vpack.c.bf16 %v442, %v442
    %450 = vmatprep.subr.bf16.mxu0 %v163
    %451 = vmatpush1.bf16.msra.mxu0 %v162
    %452 = vmatprep.subr.bf16.mxu0 %v165
    %453 = vmatpush1.bf16.msra.mxu0 %v164
    %454 = vmatprep.subr.bf16.mxu0 %v167
    %455 = vmatpush1.bf16.msra.mxu0 %v166
    %456 = vmatprep.subr.bf16.mxu0 %v169
    %457 = vmatpush1.bf16.msra.mxu0 %v168
    %458 = vmatprep.subr.bf16.mxu0 %v171
    %459 = vmatpush1.bf16.msra.mxu0 %v170
    %460 = vmatprep.subr.bf16.mxu0 %v173
    %461 = vmatpush1.bf16.msra.mxu0 %v172
    %462 = vmatprep.subr.bf16.mxu0 %v175
    %463 = vmatpush1.bf16.msra.mxu0 %v174
    %464 = vmatprep.subr.bf16.mxu0 %v177
    %465 = vmatpush1.bf16.msra.mxu0 %v176
    %466 = vmatprep.subr.bf16.mxu0 0
    %467 = vmatpush1.bf16.msra.mxu0 0
    %468 = vmatprep.subr.bf16.mxu0 0
    %469 = vmatpush1.bf16.msra.mxu0 0
    %470 = vmatprep.subr.bf16.mxu0 0
    %471 = vmatpush1.bf16.msra.mxu0 0
    %472 = vmatprep.subr.bf16.mxu0 0
    %473 = vmatpush1.bf16.msra.mxu0 0
    %474 = vmatprep.subr.bf16.mxu0 0
    %475 = vmatpush1.bf16.msra.mxu0 0
    %476 = vmatprep.subr.bf16.mxu0 0
    %477 = vmatpush1.bf16.msra.mxu0 0
    %478 = vmatprep.subr.bf16.mxu0 0
    %479 = vmatpush1.bf16.msra.mxu0 0
    %480 = vmatprep.subr.bf16.mxu0 0
    %481 = vmatpush1.bf16.msra.mxu0 0
    %482 = vmatprep.mubr.bf16.mxu0 0
    %483 = vmatmul.mubr.bf16.gmra.mrb[0].mxu0 %v449
    %v484 = vpop.f32.mrb[0].mxu0
    %v485 = vadd.f32 0.0, %v484
    %v486 = vpop.f32.mrb[0].mxu0
    %v487 = vadd.f32 0.0, %v486
    %v488 = vpop.f32.mrb[0].mxu0
    %v489 = vpop.f32.mrb[0].mxu0
    %490 = vdwg.mxu0
    %v491 = vadd.f32 %v446, %v485
    %v492 = vmul.f32 %v491, 0.5
    %v493 = vtanh.pop %v492
    %v494 = vmul.f32 %v493, 0.5
    %v495 = vadd.f32 %v494, 0.5
    %v496 = vadd.f32 %v447, %v487
    %v497 = vmul.f32 %v496, 0.5
    %v498 = vtanh.pop %v497
    %v499 = vmul.f32 %v498, 0.5
    %v500 = vadd.f32 %v499, 0.5
    %501 = vmatprep.subr.bf16.mxu0 0
    %502 = vmatpush1.bf16.msra.mxu0 %v277
    %503 = vmatprep.subr.bf16.mxu0 0
    %504 = vmatpush1.bf16.msra.mxu0 %v278
    %505 = vmatprep.subr.bf16.mxu0 0
    %506 = vmatpush1.bf16.msra.mxu0 %v279
    %507 = vmatprep.subr.bf16.mxu0 0
    %508 = vmatpush1.bf16.msra.mxu0 %v280
    %509 = vmatprep.subr.bf16.mxu0 0
    %510 = vmatpush1.bf16.msra.mxu0 %v281
    %511 = vmatprep.subr.bf16.mxu0 0
    %512 = vmatpush1.bf16.msra.mxu0 %v282
    %513 = vmatprep.subr.bf16.mxu0 0
    %514 = vmatpush1.bf16.msra.mxu0 %v283
    %515 = vmatprep.subr.bf16.mxu0 0
    %516 = vmatpush1.bf16.msra.mxu0 %v284
    %517 = vmatprep.subr.bf16.mxu0 0
    %518 = vmatpush1.bf16.msra.mxu0 0
    %519 = vmatprep.subr.bf16.mxu0 0
    %520 = vmatpush1.bf16.msra.mxu0 0
    %521 = vmatprep.subr.bf16.mxu0 0
    %522 = vmatpush1.bf16.msra.mxu0 0
    %523 = vmatprep.subr.bf16.mxu0 0
    %524 = vmatpush1.bf16.msra.mxu0 0
    %525 = vmatprep.subr.bf16.mxu0 0
    %526 = vmatpush1.bf16.msra.mxu0 0
    %527 = vmatprep.subr.bf16.mxu0 0
    %528 = vmatpush1.bf16.msra.mxu0 0
    %529 = vmatprep.subr.bf16.mxu0 0
    %530 = vmatpush1.bf16.msra.mxu0 0
    %531 = vmatprep.subr.bf16.mxu0 0
    %532 = vmatpush1.bf16.msra.mxu0 0
    %533 = vmatprep.mubr.bf16.mxu0 0
    %534 = vmatmul.mubr.bf16.gmra.mrb[0].mxu0 %v449
    %v535 = vpop.f32.mrb[0].mxu0
    %v536 = vadd.f32 %v105, %v535
    %v537 = vpop.f32.mrb[0].mxu0
    %v538 = vpop.f32.mrb[0].mxu0
    %v539 = vpop.f32.mrb[0].mxu0
    %540 = vdwg.mxu0
    %v541 = vmul.f32 %v495, %v536
    %v542 = vadd.f32 %v448, %v541
    %v543 = vtanh.pop %v542
    %v544 = vsub.f32 %v442, %v543
    %v545 = vmul.f32 %v500, %v544
    %v546 = vadd.f32 %v543, %v545
    %s547 = scalar_lea.vmem [#allocation3], 36
    %v548 = vld [vmem:[%s547] sm:$0xff]
    %v549 = vld [vmem:[%s547 + $0x8] sm:$0xf]
    %v550 = vunpack.c.l.bf16 %v548
    %v551 = vunpack.c.h.bf16 %v548
    %v552 = vunpack.c.l.bf16 %v549
    %v553 = vpack.c.bf16 %v546, %v546
    %554 = vmatprep.subr.bf16.mxu0 %v163
    %555 = vmatpush1.bf16.msra.mxu0 %v162
    %556 = vmatprep.subr.bf16.mxu0 %v165
    %557 = vmatpush1.bf16.msra.mxu0 %v164
    %558 = vmatprep.subr.bf16.mxu0 %v167
    %559 = vmatpush1.bf16.msra.mxu0 %v166
    %560 = vmatprep.subr.bf16.mxu0 %v169
    %561 = vmatpush1.bf16.msra.mxu0 %v168
    %562 = vmatprep.subr.bf16.mxu0 %v171
    %563 = vmatpush1.bf16.msra.mxu0 %v170
    %564 = vmatprep.subr.bf16.mxu0 %v173
    %565 = vmatpush1.bf16.msra.mxu0 %v172
    %566 = vmatprep.subr.bf16.mxu0 %v175
    %567 = vmatpush1.bf16.msra.mxu0 %v174
    %568 = vmatprep.subr.bf16.mxu0 %v177
    %569 = vmatpush1.bf16.msra.mxu0 %v176
    %570 = vmatprep.subr.bf16.mxu0 0
    %571 = vmatpush1.bf16.msra.mxu0 0
    %572 = vmatprep.subr.bf16.mxu0 0
    %573 = vmatpush1.bf16.msra.mxu0 0
    %574 = vmatprep.subr.bf16.mxu0 0
    %575 = vmatpush1.bf16.msra.mxu0 0
    %576 = vmatprep.subr.bf16.mxu0 0
    %577 = vmatpush1.bf16.msra.mxu0 0
    %578 = vmatprep.subr.bf16.mxu0 0
    %579 = vmatpush1.bf16.msra.mxu0 0
    %580 = vmatprep.subr.bf16.mxu0 0
    %581 = vmatpush1.bf16.msra.mxu0 0
    %582 = vmatprep.subr.bf16.mxu0 0
    %583 = vmatpush1.bf16.msra.mxu0 0
    %584 = vmatprep.subr.bf16.mxu0 0
    %585 = vmatpush1.bf16.msra.mxu0 0
    %586 = vmatprep.mubr.bf16.mxu0 0
    %587 = vmatmul.mubr.bf16.gmra.mrb[0].mxu0 %v553
    %v588 = vpop.f32.mrb[0].mxu0
    %v589 = vadd.f32 0.0, %v588
    %v590 = vpop.f32.mrb[0].mxu0
    %v591 = vadd.f32 0.0, %v590
    %v592 = vpop.f32.mrb[0].mxu0
    %v593 = vpop.f32.mrb[0].mxu0
    %594 = vdwg.mxu0
    %v595 = vadd.f32 %v550, %v589
    %v596 = vmul.f32 %v595, 0.5
    %v597 = vtanh.pop %v596
    %v598 = vmul.f32 %v597, 0.5
    %v599 = vadd.f32 %v598, 0.5
    %v600 = vadd.f32 %v551, %v591
    %v601 = vmul.f32 %v600, 0.5
    %v602 = vtanh.pop %v601
    %v603 = vmul.f32 %v602, 0.5
    %v604 = vadd.f32 %v603, 0.5
    %605 = vmatprep.subr.bf16.mxu0 0
    %606 = vmatpush1.bf16.msra.mxu0 %v277
    %607 = vmatprep.subr.bf16.mxu0 0
    %608 = vmatpush1.bf16.msra.mxu0 %v278
    %609 = vmatprep.subr.bf16.mxu0 0
    %610 = vmatpush1.bf16.msra.mxu0 %v279
    %611 = vmatprep.subr.bf16.mxu0 0
    %612 = vmatpush1.bf16.msra.mxu0 %v280
    %613 = vmatprep.subr.bf16.mxu0 0
    %614 = vmatpush1.bf16.msra.mxu0 %v281
    %615 = vmatprep.subr.bf16.mxu0 0
    %616 = vmatpush1.bf16.msra.mxu0 %v282
    %617 = vmatprep.subr.bf16.mxu0 0
    %618 = vmatpush1.bf16.msra.mxu0 %v283
    %619 = vmatprep.subr.bf16.mxu0 0
    %620 = vmatpush1.bf16.msra.mxu0 %v284
    %621 = vmatprep.subr.bf16.mxu0 0
    %622 = vmatpush1.bf16.msra.mxu0 0
    %623 = vmatprep.subr.bf16.mxu0 0
    %624 = vmatpush1.bf16.msra.mxu0 0
    %625 = vmatprep.subr.bf16.mxu0 0
    %626 = vmatpush1.bf16.msra.mxu0 0
    %627 = vmatprep.subr.bf16.mxu0 0
    %628 = vmatpush1.bf16.msra.mxu0 0
    %629 = vmatprep.subr.bf16.mxu0 0
    %630 = vmatpush1.bf16.msra.mxu0 0
    %631 = vmatprep.subr.bf16.mxu0 0
    %632 = vmatpush1.bf16.msra.mxu0 0
    %633 = vmatprep.subr.bf16.mxu0 0
    %634 = vmatpush1.bf16.msra.mxu0 0
    %635 = vmatprep.subr.bf16.mxu0 0
    %636 = vmatpush1.bf16.msra.mxu0 0
    %637 = vmatprep.mubr.bf16.mxu0 0
    %638 = vmatmul.mubr.bf16.gmra.mrb[0].mxu0 %v553
    %v639 = vpop.f32.mrb[0].mxu0
    %v640 = vadd.f32 %v105, %v639
    %v641 = vpop.f32.mrb[0].mxu0
    %v642 = vpop.f32.mrb[0].mxu0
    %v643 = vpop.f32.mrb[0].mxu0
    %644 = vdwg.mxu0
    %v645 = vmul.f32 %v599, %v640
    %v646 = vadd.f32 %v552, %v645
    %v647 = vtanh.pop %v646
    %v648 = vsub.f32 %v546, %v647
    %v649 = vmul.f32 %v604, %v648
    %v650 = vadd.f32 %v647, %v649
    %s651 = scalar_lea.vmem [#allocation3], 48
    %v652 = vld [vmem:[%s651] sm:$0xff]
    %v653 = vld [vmem:[%s651 + $0x8] sm:$0xf]
    %v654 = vunpack.c.l.bf16 %v652
    %v655 = vunpack.c.h.bf16 %v652
    %v656 = vunpack.c.l.bf16 %v653
    %v657 = vpack.c.bf16 %v650, %v650
    %658 = vmatprep.subr.bf16.mxu0 %v163
    %659 = vmatpush1.bf16.msra.mxu0 %v162
    %660 = vmatprep.subr.bf16.mxu0 %v165
    %661 = vmatpush1.bf16.msra.mxu0 %v164
    %662 = vmatprep.subr.bf16.mxu0 %v167
    %663 = vmatpush1.bf16.msra.mxu0 %v166
    %664 = vmatprep.subr.bf16.mxu0 %v169
    %665 = vmatpush1.bf16.msra.mxu0 %v168
    %666 = vmatprep.subr.bf16.mxu0 %v171
    %667 = vmatpush1.bf16.msra.mxu0 %v170
    %668 = vmatprep.subr.bf16.mxu0 %v173
    %669 = vmatpush1.bf16.msra.mxu0 %v172
    %670 = vmatprep.subr.bf16.mxu0 %v175
    %671 = vmatpush1.bf16.msra.mxu0 %v174
    %672 = vmatprep.subr.bf16.mxu0 %v177
    %673 = vmatpush1.bf16.msra.mxu0 %v176
    %674 = vmatprep.subr.bf16.mxu0 0
    %675 = vmatpush1.bf16.msra.mxu0 0
    %676 = vmatprep.subr.bf16.mxu0 0
    %677 = vmatpush1.bf16.msra.mxu0 0
    %678 = vmatprep.subr.bf16.mxu0 0
    %679 = vmatpush1.bf16.msra.mxu0 0
    %680 = vmatprep.subr.bf16.mxu0 0
    %681 = vmatpush1.bf16.msra.mxu0 0
    %682 = vmatprep.subr.bf16.mxu0 0
    %683 = vmatpush1.bf16.msra.mxu0 0
    %684 = vmatprep.subr.bf16.mxu0 0
    %685 = vmatpush1.bf16.msra.mxu0 0
    %686 = vmatprep.subr.bf16.mxu0 0
    %687 = vmatpush1.bf16.msra.mxu0 0
    %688 = vmatprep.subr.bf16.mxu0 0
    %689 = vmatpush1.bf16.msra.mxu0 0
    %690 = vmatprep.mubr.bf16.mxu0 0
    %691 = vmatmul.mubr.bf16.gmra.mrb[0].mxu0 %v657
    %v692 = vpop.f32.mrb[0].mxu0
    %v693 = vadd.f32 0.0, %v692
    %v694 = vpop.f32.mrb[0].mxu0
    %v695 = vadd.f32 0.0, %v694
    %v696 = vpop.f32.mrb[0].mxu0
    %v697 = vpop.f32.mrb[0].mxu0
    %698 = vdwg.mxu0
    %v699 = vadd.f32 %v654, %v693
    %v700 = vmul.f32 %v699, 0.5
    %v701 = vtanh.pop %v700
    %v702 = vmul.f32 %v701, 0.5
    %v703 = vadd.f32 %v702, 0.5
    %v704 = vadd.f32 %v655, %v695
    %v705 = vmul.f32 %v704, 0.5
    %v706 = vtanh.pop %v705
    %v707 = vmul.f32 %v706, 0.5
    %v708 = vadd.f32 %v707, 0.5
    %709 = vmatprep.subr.bf16.mxu0 0
    %710 = vmatpush1.bf16.msra.mxu0 %v277
    %711 = vmatprep.subr.bf16.mxu0 0
    %712 = vmatpush1.bf16.msra.mxu0 %v278
    %713 = vmatprep.subr.bf16.mxu0 0
    %714 = vmatpush1.bf16.msra.mxu0 %v279
    %715 = vmatprep.subr.bf16.mxu0 0
    %716 = vmatpush1.bf16.msra.mxu0 %v280
    %717 = vmatprep.subr.bf16.mxu0 0
    %718 = vmatpush1.bf16.msra.mxu0 %v281
    %719 = vmatprep.subr.bf16.mxu0 0
    %720 = vmatpush1.bf16.msra.mxu0 %v282
    %721 = vmatprep.subr.bf16.mxu0 0
    %722 = vmatpush1.bf16.msra.mxu0 %v283
    %723 = vmatprep.subr.bf16.mxu0 0
    %724 = vmatpush1.bf16.msra.mxu0 %v284
    %725 = vmatprep.subr.bf16.mxu0 0
    %726 = vmatpush1.bf16.msra.mxu0 0
    %727 = vmatprep.subr.bf16.mxu0 0
    %728 = vmatpush1.bf16.msra.mxu0 0
    %729 = vmatprep.subr.bf16.mxu0 0
    %730 = vmatpush1.bf16.msra.mxu0 0
    %731 = vmatprep.subr.bf16.mxu0 0
    %732 = vmatpush1.bf16.msra.mxu0 0
    %733 = vmatprep.subr.bf16.mxu0 0
    %734 = vmatpush1.bf16.msra.mxu0 0
    %735 = vmatprep.subr.bf16.mxu0 0
    %736 = vmatpush1.bf16.msra.mxu0 0
    %737 = vmatprep.subr.bf16.mxu0 0
    %738 = vmatpush1.bf16.msra.mxu0 0
    %739 = vmatprep.subr.bf16.mxu0 0
    %740 = vmatpush1.bf16.msra.mxu0 0
    %741 = vmatprep.mubr.bf16.mxu0 0
    %742 = vmatmul.mubr.bf16.gmra.mrb[0].mxu0 %v657
    %v743 = vpop.f32.mrb[0].mxu0
    %v744 = vadd.f32 %v105, %v743
    %v745 = vpop.f32.mrb[0].mxu0
    %v746 = vpop.f32.mrb[0].mxu0
    %v747 = vpop.f32.mrb[0].mxu0
    %748 = vdwg.mxu0
    %v749 = vmul.f32 %v703, %v744
    %v750 = vadd.f32 %v656, %v749
    %v751 = vtanh.pop %v750
    %v752 = vsub.f32 %v650, %v751
    %v753 = vmul.f32 %v708, %v752
    %v754 = vadd.f32 %v751, %v753
    %s755 = scalar_lea.vmem [#allocation3], 60
    %v756 = vld [vmem:[%s755] sm:$0xff]
    %v757 = vld [vmem:[%s755 + $0x8] sm:$0xf]
    %v758 = vunpack.c.l.bf16 %v756
    %v759 = vunpack.c.h.bf16 %v756
    %v760 = vunpack.c.l.bf16 %v757
    %v761 = vpack.c.bf16 %v754, %v754
    %762 = vmatprep.subr.bf16.mxu0 %v163
    %763 = vmatpush1.bf16.msra.mxu0 %v162
    %764 = vmatprep.subr.bf16.mxu0 %v165
    %765 = vmatpush1.bf16.msra.mxu0 %v164
    %766 = vmatprep.subr.bf16.mxu0 %v167
    %767 = vmatpush1.bf16.msra.mxu0 %v166
    %768 = vmatprep.subr.bf16.mxu0 %v169
    %769 = vmatpush1.bf16.msra.mxu0 %v168
    %770 = vmatprep.subr.bf16.mxu0 %v171
    %771 = vmatpush1.bf16.msra.mxu0 %v170
    %772 = vmatprep.subr.bf16.mxu0 %v173
    %773 = vmatpush1.bf16.msra.mxu0 %v172
    %774 = vmatprep.subr.bf16.mxu0 %v175
    %775 = vmatpush1.bf16.msra.mxu0 %v174
    %776 = vmatprep.subr.bf16.mxu0 %v177
    %777 = vmatpush1.bf16.msra.mxu0 %v176
    %778 = vmatprep.subr.bf16.mxu0 0
    %779 = vmatpush1.bf16.msra.mxu0 0
    %780 = vmatprep.subr.bf16.mxu0 0
    %781 = vmatpush1.bf16.msra.mxu0 0
    %782 = vmatprep.subr.bf16.mxu0 0
    %783 = vmatpush1.bf16.msra.mxu0 0
    %784 = vmatprep.subr.bf16.mxu0 0
    %785 = vmatpush1.bf16.msra.mxu0 0
    %786 = vmatprep.subr.bf16.mxu0 0
    %787 = vmatpush1.bf16.msra.mxu0 0
    %788 = vmatprep.subr.bf16.mxu0 0
    %789 = vmatpush1.bf16.msra.mxu0 0
    %790 = vmatprep.subr.bf16.mxu0 0
    %791 = vmatpush1.bf16.msra.mxu0 0
    %792 = vmatprep.subr.bf16.mxu0 0
    %793 = vmatpush1.bf16.msra.mxu0 0
    %794 = vmatprep.mubr.bf16.mxu0 0
    %795 = vmatmul.mubr.bf16.gmra.mrb[0].mxu0 %v761
    %v796 = vpop.f32.mrb[0].mxu0
    %v797 = vadd.f32 0.0, %v796
    %v798 = vpop.f32.mrb[0].mxu0
    %v799 = vadd.f32 0.0, %v798
    %v800 = vpop.f32.mrb[0].mxu0
    %v801 = vpop.f32.mrb[0].mxu0
    %802 = vdwg.mxu0
    %v803 = vadd.f32 %v758, %v797
    %v804 = vmul.f32 %v803, 0.5
    %v805 = vtanh.pop %v804
    %v806 = vmul.f32 %v805, 0.5
    %v807 = vadd.f32 %v806, 0.5
    %v808 = vadd.f32 %v759, %v799
    %v809 = vmul.f32 %v808, 0.5
    %v810 = vtanh.pop %v809
    %v811 = vmul.f32 %v810, 0.5
    %v812 = vadd.f32 %v811, 0.5
    %813 = vmatprep.subr.bf16.mxu0 0
    %814 = vmatpush1.bf16.msra.mxu0 %v277
    %815 = vmatprep.subr.bf16.mxu0 0
    %816 = vmatpush1.bf16.msra.mxu0 %v278
    %817 = vmatprep.subr.bf16.mxu0 0
    %818 = vmatpush1.bf16.msra.mxu0 %v279
    %819 = vmatprep.subr.bf16.mxu0 0
    %820 = vmatpush1.bf16.msra.mxu0 %v280
    %821 = vmatprep.subr.bf16.mxu0 0
    %822 = vmatpush1.bf16.msra.mxu0 %v281
    %823 = vmatprep.subr.bf16.mxu0 0
    %824 = vmatpush1.bf16.msra.mxu0 %v282
    %825 = vmatprep.subr.bf16.mxu0 0
    %826 = vmatpush1.bf16.msra.mxu0 %v283
    %827 = vmatprep.subr.bf16.mxu0 0
    %828 = vmatpush1.bf16.msra.mxu0 %v284
    %829 = vmatprep.subr.bf16.mxu0 0
    %830 = vmatpush1.bf16.msra.mxu0 0
    %831 = vmatprep.subr.bf16.mxu0 0
    %832 = vmatpush1.bf16.msra.mxu0 0
    %833 = vmatprep.subr.bf16.mxu0 0
    %834 = vmatpush1.bf16.msra.mxu0 0
    %835 = vmatprep.subr.bf16.mxu0 0
    %836 = vmatpush1.bf16.msra.mxu0 0
    %837 = vmatprep.subr.bf16.mxu0 0
    %838 = vmatpush1.bf16.msra.mxu0 0
    %839 = vmatprep.subr.bf16.mxu0 0
    %840 = vmatpush1.bf16.msra.mxu0 0
    %841 = vmatprep.subr.bf16.mxu0 0
    %842 = vmatpush1.bf16.msra.mxu0 0
    %843 = vmatprep.subr.bf16.mxu0 0
    %844 = vmatpush1.bf16.msra.mxu0 0
    %845 = vmatprep.mubr.bf16.mxu0 0
    %846 = vmatmul.mubr.bf16.gmra.mrb[0].mxu0 %v761
    %v847 = vpop.f32.mrb[0].mxu0
    %v848 = vadd.f32 %v105, %v847
    %v849 = vpop.f32.mrb[0].mxu0
    %v850 = vpop.f32.mrb[0].mxu0
    %v851 = vpop.f32.mrb[0].mxu0
    %852 = vdwg.mxu0
    %v853 = vmul.f32 %v807, %v848
    %v854 = vadd.f32 %v760, %v853
    %v855 = vtanh.pop %v854
    %v856 = vsub.f32 %v754, %v855
    %v857 = vmul.f32 %v812, %v856
    %v858 = vadd.f32 %v855, %v857
    %s859 = scalar_lea.vmem [#allocation3], 72
    %v860 = vld [vmem:[%s859] sm:$0xff]
    %v861 = vld [vmem:[%s859 + $0x8] sm:$0xf]
    %v862 = vunpack.c.l.bf16 %v860
    %v863 = vunpack.c.h.bf16 %v860
    %v864 = vunpack.c.l.bf16 %v861
    %v865 = vpack.c.bf16 %v858, %v858
    %866 = vmatprep.subr.bf16.mxu0 %v163
    %867 = vmatpush1.bf16.msra.mxu0 %v162
    %868 = vmatprep.subr.bf16.mxu0 %v165
    %869 = vmatpush1.bf16.msra.mxu0 %v164
    %870 = vmatprep.subr.bf16.mxu0 %v167
    %871 = vmatpush1.bf16.msra.mxu0 %v166
    %872 = vmatprep.subr.bf16.mxu0 %v169
    %873 = vmatpush1.bf16.msra.mxu0 %v168
    %874 = vmatprep.subr.bf16.mxu0 %v171
    %875 = vmatpush1.bf16.msra.mxu0 %v170
    %876 = vmatprep.subr.bf16.mxu0 %v173
    %877 = vmatpush1.bf16.msra.mxu0 %v172
    %878 = vmatprep.subr.bf16.mxu0 %v175
    %879 = vmatpush1.bf16.msra.mxu0 %v174
    %880 = vmatprep.subr.bf16.mxu0 %v177
    %881 = vmatpush1.bf16.msra.mxu0 %v176
    %882 = vmatprep.subr.bf16.mxu0 0
    %883 = vmatpush1.bf16.msra.mxu0 0
    %884 = vmatprep.subr.bf16.mxu0 0
    %885 = vmatpush1.bf16.msra.mxu0 0
    %886 = vmatprep.subr.bf16.mxu0 0
    %887 = vmatpush1.bf16.msra.mxu0 0
    %888 = vmatprep.subr.bf16.mxu0 0
    %889 = vmatpush1.bf16.msra.mxu0 0
    %890 = vmatprep.subr.bf16.mxu0 0
    %891 = vmatpush1.bf16.msra.mxu0 0
    %892 = vmatprep.subr.bf16.mxu0 0
    %893 = vmatpush1.bf16.msra.mxu0 0
    %894 = vmatprep.subr.bf16.mxu0 0
    %895 = vmatpush1.bf16.msra.mxu0 0
    %896 = vmatprep.subr.bf16.mxu0 0
    %897 = vmatpush1.bf16.msra.mxu0 0
    %898 = vmatprep.mubr.bf16.mxu0 0
    %899 = vmatmul.mubr.bf16.gmra.mrb[0].mxu0 %v865
    %v900 = vpop.f32.mrb[0].mxu0
    %v901 = vadd.f32 0.0, %v900
    %v902 = vpop.f32.mrb[0].mxu0
    %v903 = vadd.f32 0.0, %v902
    %v904 = vpop.f32.mrb[0].mxu0
    %v905 = vpop.f32.mrb[0].mxu0
    %906 = vdwg.mxu0
    %v907 = vadd.f32 %v862, %v901
    %v908 = vmul.f32 %v907, 0.5
    %v909 = vtanh.pop %v908
    %v910 = vmul.f32 %v909, 0.5
    %v911 = vadd.f32 %v910, 0.5
    %v912 = vadd.f32 %v863, %v903
    %v913 = vmul.f32 %v912, 0.5
    %v914 = vtanh.pop %v913
    %v915 = vmul.f32 %v914, 0.5
    %v916 = vadd.f32 %v915, 0.5
    %917 = vmatprep.subr.bf16.mxu0 0
    %918 = vmatpush1.bf16.msra.mxu0 %v277
    %919 = vmatprep.subr.bf16.mxu0 0
    %920 = vmatpush1.bf16.msra.mxu0 %v278
    %921 = vmatprep.subr.bf16.mxu0 0
    %922 = vmatpush1.bf16.msra.mxu0 %v279
    %923 = vmatprep.subr.bf16.mxu0 0
    %924 = vmatpush1.bf16.msra.mxu0 %v280
    %925 = vmatprep.subr.bf16.mxu0 0
    %926 = vmatpush1.bf16.msra.mxu0 %v281
    %927 = vmatprep.subr.bf16.mxu0 0
    %928 = vmatpush1.bf16.msra.mxu0 %v282
    %929 = vmatprep.subr.bf16.mxu0 0
    %930 = vmatpush1.bf16.msra.mxu0 %v283
    %931 = vmatprep.subr.bf16.mxu0 0
    %932 = vmatpush1.bf16.msra.mxu0 %v284
    %933 = vmatprep.subr.bf16.mxu0 0
    %934 = vmatpush1.bf16.msra.mxu0 0
    %935 = vmatprep.subr.bf16.mxu0 0
    %936 = vmatpush1.bf16.msra.mxu0 0
    %937 = vmatprep.subr.bf16.mxu0 0
    %938 = vmatpush1.bf16.msra.mxu0 0
    %939 = vmatprep.subr.bf16.mxu0 0
    %940 = vmatpush1.bf16.msra.mxu0 0
    %941 = vmatprep.subr.bf16.mxu0 0
    %942 = vmatpush1.bf16.msra.mxu0 0
    %943 = vmatprep.subr.bf16.mxu0 0
    %944 = vmatpush1.bf16.msra.mxu0 0
    %945 = vmatprep.subr.bf16.mxu0 0
    %946 = vmatpush1.bf16.msra.mxu0 0
    %947 = vmatprep.subr.bf16.mxu0 0
    %948 = vmatpush1.bf16.msra.mxu0 0
    %949 = vmatprep.mubr.bf16.mxu0 0
    %950 = vmatmul.mubr.bf16.gmra.mrb[0].mxu0 %v865
    %v951 = vpop.f32.mrb[0].mxu0
    %v952 = vadd.f32 %v105, %v951
    %v953 = vpop.f32.mrb[0].mxu0
    %v954 = vpop.f32.mrb[0].mxu0
    %v955 = vpop.f32.mrb[0].mxu0
    %956 = vdwg.mxu0
    %v957 = vmul.f32 %v911, %v952
    %v958 = vadd.f32 %v864, %v957
    %v959 = vtanh.pop %v958
    %v960 = vsub.f32 %v858, %v959
    %v961 = vmul.f32 %v916, %v960
    %v962 = vadd.f32 %v959, %v961
    %s963 = scalar_lea.vmem [#allocation3], 84
    %v964 = vld [vmem:[%s963] sm:$0xff]
    %v965 = vld [vmem:[%s963 + $0x8] sm:$0xf]
    %v966 = vunpack.c.l.bf16 %v964
    %v967 = vunpack.c.h.bf16 %v964
    %v968 = vunpack.c.l.bf16 %v965
    %v969 = vpack.c.bf16 %v962, %v962
    %970 = vmatprep.subr.bf16.mxu0 %v163
    %971 = vmatpush1.bf16.msra.mxu0 %v162
    %972 = vmatprep.subr.bf16.mxu0 %v165
    %973 = vmatpush1.bf16.msra.mxu0 %v164
    %974 = vmatprep.subr.bf16.mxu0 %v167
    %975 = vmatpush1.bf16.msra.mxu0 %v166
    %976 = vmatprep.subr.bf16.mxu0 %v169
    %977 = vmatpush1.bf16.msra.mxu0 %v168
    %978 = vmatprep.subr.bf16.mxu0 %v171
    %979 = vmatpush1.bf16.msra.mxu0 %v170
    %980 = vmatprep.subr.bf16.mxu0 %v173
    %981 = vmatpush1.bf16.msra.mxu0 %v172
    %982 = vmatprep.subr.bf16.mxu0 %v175
    %983 = vmatpush1.bf16.msra.mxu0 %v174
    %984 = vmatprep.subr.bf16.mxu0 %v177
    %985 = vmatpush1.bf16.msra.mxu0 %v176
    %986 = vmatprep.subr.bf16.mxu0 0
    %987 = vmatpush1.bf16.msra.mxu0 0
    %988 = vmatprep.subr.bf16.mxu0 0
    %989 = vmatpush1.bf16.msra.mxu0 0
    %990 = vmatprep.subr.bf16.mxu0 0
    %991 = vmatpush1.bf16.msra.mxu0 0
    %992 = vmatprep.subr.bf16.mxu0 0
    %993 = vmatpush1.bf16.msra.mxu0 0
    %994 = vmatprep.subr.bf16.mxu0 0
    %995 = vmatpush1.bf16.msra.mxu0 0
    %996 = vmatprep.subr.bf16.mxu0 0
    %997 = vmatpush1.bf16.msra.mxu0 0
    %998 = vmatprep.subr.bf16.mxu0 0
    %999 = vmatpush1.bf16.msra.mxu0 0
    %1000 = vmatprep.subr.bf16.mxu0 0
    %1001 = vmatpush1.bf16.msra.mxu0 0
    %1002 = vmatprep.mubr.bf16.mxu0 0
    %1003 = vmatmul.mubr.bf16.gmra.mrb[0].mxu0 %v969
    %v1004 = vpop.f32.mrb[0].mxu0
    %v1005 = vadd.f32 0.0, %v1004
    %v1006 = vpop.f32.mrb[0].mxu0
    %v1007 = vadd.f32 0.0, %v1006
    %v1008 = vpop.f32.mrb[0].mxu0
    %v1009 = vpop.f32.mrb[0].mxu0
    %1010 = vdwg.mxu0
    %v1011 = vadd.f32 %v966, %v1005
    %v1012 = vmul.f32 %v1011, 0.5
    %v1013 = vtanh.pop %v1012
    %v1014 = vmul.f32 %v1013, 0.5
    %v1015 = vadd.f32 %v1014, 0.5
    %v1016 = vadd.f32 %v967, %v1007
    %v1017 = vmul.f32 %v1016, 0.5
    %v1018 = vtanh.pop %v1017
    %v1019 = vmul.f32 %v1018, 0.5
    %v1020 = vadd.f32 %v1019, 0.5
    %1021 = vmatprep.subr.bf16.mxu0 0
    %1022 = vmatpush1.bf16.msra.mxu0 %v277
    %1023 = vmatprep.subr.bf16.mxu0 0
    %1024 = vmatpush1.bf16.msra.mxu0 %v278
    %1025 = vmatprep.subr.bf16.mxu0 0
    %1026 = vmatpush1.bf16.msra.mxu0 %v279
    %1027 = vmatprep.subr.bf16.mxu0 0
    %1028 = vmatpush1.bf16.msra.mxu0 %v280
    %1029 = vmatprep.subr.bf16.mxu0 0
    %1030 = vmatpush1.bf16.msra.mxu0 %v281
    %1031 = vmatprep.subr.bf16.mxu0 0
    %1032 = vmatpush1.bf16.msra.mxu0 %v282
    %1033 = vmatprep.subr.bf16.mxu0 0
    %1034 = vmatpush1.bf16.msra.mxu0 %v283
    %1035 = vmatprep.subr.bf16.mxu0 0
    %1036 = vmatpush1.bf16.msra.mxu0 %v284
    %1037 = vmatprep.subr.bf16.mxu0 0
    %1038 = vmatpush1.bf16.msra.mxu0 0
    %1039 = vmatprep.subr.bf16.mxu0 0
    %1040 = vmatpush1.bf16.msra.mxu0 0
    %1041 = vmatprep.subr.bf16.mxu0 0
    %1042 = vmatpush1.bf16.msra.mxu0 0
    %1043 = vmatprep.subr.bf16.mxu0 0
    %1044 = vmatpush1.bf16.msra.mxu0 0
    %1045 = vmatprep.subr.bf16.mxu0 0
    %1046 = vmatpush1.bf16.msra.mxu0 0
    %1047 = vmatprep.subr.bf16.mxu0 0
    %1048 = vmatpush1.bf16.msra.mxu0 0
    %1049 = vmatprep.subr.bf16.mxu0 0
    %1050 = vmatpush1.bf16.msra.mxu0 0
    %1051 = vmatprep.subr.bf16.mxu0 0
    %1052 = vmatpush1.bf16.msra.mxu0 0
    %1053 = vmatprep.mubr.bf16.mxu0 0
    %1054 = vmatmul.mubr.bf16.gmra.mrb[0].mxu0 %v969
    %v1055 = vpop.f32.mrb[0].mxu0
    %v1056 = vadd.f32 %v105, %v1055
    %v1057 = vpop.f32.mrb[0].mxu0
    %v1058 = vpop.f32.mrb[0].mxu0
    %v1059 = vpop.f32.mrb[0].mxu0
    %1060 = vdwg.mxu0
    %v1061 = vmul.f32 %v1015, %v1056
    %v1062 = vadd.f32 %v968, %v1061
    %v1063 = vtanh.pop %v1062
    %v1064 = vsub.f32 %v962, %v1063
    %v1065 = vmul.f32 %v1020, %v1064
    %v1066 = vadd.f32 %v1063, %v1065
    %1067 = vst [vmem:[#allocation2] sm:$0xff] %v1066
    // Predicated region
    $region38: #{tpu_custom_call.1} parent=1 // pred_check
      %p1068 = pneg %p63
    $region39: #{tpu_custom_call.1} parent=1 // pred_check_branch
      %1070 = sbr.rel (%p1068) target = $region41
    $region40: #{tpu_custom_call.1} parent=1 // pred_region
      %v1071 = vpack.c.bf16 %v1066, %v1066
      %v1072 = vld [vmem:[#allocation8] sm:$0xf]
      %v1073 = vld [vmem:[#allocation8 + $0x4] sm:$0xf]
      %v1074 = vld [vmem:[#allocation8 + $0x8] sm:$0xf]
      %v1075 = vld [vmem:[#allocation8 + $0xc] sm:$0xf]
      %v1076 = vld [vmem:[#allocation8 + $0x10] sm:$0xf]
      %v1077 = vld [vmem:[#allocation8 + $0x14] sm:$0xf]
      %v1078 = vld [vmem:[#allocation8 + $0x18] sm:$0xf]
      %v1079 = vld [vmem:[#allocation8 + $0x1c] sm:$0xf]
      %v1080 = vld [vmem:[#allocation8 + $0x20] sm:$0xf]
      %v1081 = vld [vmem:[#allocation8 + $0x24] sm:$0xf]
      %v1082 = vld [vmem:[#allocation8 + $0x28] sm:$0xf]
      %v1083 = vld [vmem:[#allocation8 + $0x2c] sm:$0xf]
      %v1084 = vld [vmem:[#allocation8 + $0x30] sm:$0xf]
      %v1085 = vld [vmem:[#allocation8 + $0x34] sm:$0xf]
      %v1086 = vld [vmem:[#allocation8 + $0x38] sm:$0xf]
      %v1087 = vld [vmem:[#allocation8 + $0x3c] sm:$0xf]
      %v1088 = vld [vmem:[%s4] sm:$0x1]
      %v1090 = vlaneseq
      %v1091 = vshrl.u32 %v1090, 7
      %v1092 = vsub.s32 0, %v1091
      %v1093 = vrot.slane %v1088, %v1092
      %v1111 = vunpack.c.l.b16 %v1072
      %v1112 = vunpack.c.l.b16 %v1073
      %v1113 = vunpack.c.l.b16 %v1074
      %v1114 = vunpack.c.l.b16 %v1075
      %v1115 = vunpack.c.l.b16 %v1076
      %v1116 = vunpack.c.l.b16 %v1077
      %v1117 = vunpack.c.l.b16 %v1078
      %v1118 = vunpack.c.l.b16 %v1079
      %v1119 = vunpack.c.l.b16 %v1080
      %v1120 = vunpack.c.l.b16 %v1081
      %v1121 = vunpack.c.l.b16 %v1082
      %v1122 = vunpack.c.l.b16 %v1083
      %v1123 = vunpack.c.l.b16 %v1084
      %v1124 = vunpack.c.l.b16 %v1085
      %v1125 = vunpack.c.l.b16 %v1086
      %v1126 = vunpack.c.l.b16 %v1087
      %v1127 = vpack.c.b16 %v1112, %v1111
      %v1128 = vpack.c.b16 %v1114, %v1113
      %v1129 = vpack.c.b16 %v1116, %v1115
      %v1130 = vpack.c.b16 %v1118, %v1117
      %v1131 = vpack.c.b16 %v1120, %v1119
      %v1132 = vpack.c.b16 %v1122, %v1121
      %v1133 = vpack.c.b16 %v1124, %v1123
      %v1134 = vpack.c.b16 %v1126, %v1125
      %1143 = vmatprep.subr.bf16.mxu0 0
      %1144 = vmatpush1.bf16.msra.mxu0 %v1127
      %1145 = vmatprep.subr.bf16.mxu0 0
      %1146 = vmatpush1.bf16.msra.mxu0 %v1128
      %1147 = vmatprep.subr.bf16.mxu0 0
      %1148 = vmatpush1.bf16.msra.mxu0 %v1129
      %1149 = vmatprep.subr.bf16.mxu0 0
      %1150 = vmatpush1.bf16.msra.mxu0 %v1130
      %1151 = vmatprep.subr.bf16.mxu0 0
      %1152 = vmatpush1.bf16.msra.mxu0 %v1131
      %1153 = vmatprep.subr.bf16.mxu0 0
      %1154 = vmatpush1.bf16.msra.mxu0 %v1132
      %1155 = vmatprep.subr.bf16.mxu0 0
      %1156 = vmatpush1.bf16.msra.mxu0 %v1133
      %1157 = vmatprep.subr.bf16.mxu0 0
      %1158 = vmatpush1.bf16.msra.mxu0 %v1134
      %1159 = vmatprep.subr.bf16.mxu0 0
      %1160 = vmatpush1.bf16.msra.mxu0 0
      %1161 = vmatprep.subr.bf16.mxu0 0
      %1162 = vmatpush1.bf16.msra.mxu0 0
      %1163 = vmatprep.subr.bf16.mxu0 0
      %1164 = vmatpush1.bf16.msra.mxu0 0
      %1165 = vmatprep.subr.bf16.mxu0 0
      %1166 = vmatpush1.bf16.msra.mxu0 0
      %1167 = vmatprep.subr.bf16.mxu0 0
      %1168 = vmatpush1.bf16.msra.mxu0 0
      %1169 = vmatprep.subr.bf16.mxu0 0
      %1170 = vmatpush1.bf16.msra.mxu0 0
      %1171 = vmatprep.subr.bf16.mxu0 0
      %1172 = vmatpush1.bf16.msra.mxu0 0
      %1173 = vmatprep.subr.bf16.mxu0 0
      %1174 = vmatpush1.bf16.msra.mxu0 0
      %1175 = vmatprep.mubr.bf16.mxu0 0
      %1176 = vmatmul.mubr.bf16.gmra.mrb[0].mxu0 %v1071
      %v1177 = vpop.f32.mrb[0].mxu0
      %v1178 = vadd.f32 %v1093, %v1177
      %v1179 = vpop.f32.mrb[0].mxu0
      %v1180 = vpop.f32.mrb[0].mxu0
      %v1181 = vpop.f32.mrb[0].mxu0
      %1182 = vdwg.mxu0
      %1183 = vst [vmem:[#allocation9] sm:$0xff] %v1178
    $region41: #{tpu_custom_call.1} parent=1 // pred_fallthru
      _
    // Predicated region
    $region42: #{tpu_custom_call.1} parent=1 // pred_check
      _
    $region43: #{tpu_custom_call.1} parent=1 // pred_check_branch
      %1185 = sbr.rel (0) target = $region45
    $region44: #{tpu_custom_call.1} parent=1 // pred_region
      %s1187 = ssub.s32 128, 128
      %1188 = vsyncadd [#allocation5], %s1187
      %s1190 = sshll.u32 [#allocation9], 4
      %s1191 = int_to_ptr.vmem [resolvable:$true] %s1190
      %1193 = dma.vmem_to_hbm [thread:$0]  %s1191, 128, %s5, [#allocation5]
    $region45: #{tpu_custom_call.1} parent=1 // pred_fallthru
      _
    // Predicated region
    $region46: #{tpu_custom_call.1} parent=1 // pred_check
      _
    $region47: #{tpu_custom_call.1} parent=1 // pred_check_branch
      %1195 = sbr.rel (0) target = $region49
    $region48: #{tpu_custom_call.1} parent=1 // pred_region
      %1196 = dma.done [#allocation5], 128
    $region49: #{tpu_custom_call.1} parent=1 // pred_fallthru
      _
    %1197 = vsyncpa [#allocation4], 1
    %1198 = vsyncpa [#allocation7], 1
    %1199 = vsyncpa [#allocation5], 1

</llo_original>
